<compile_context>
chip_gen: v7x
topology: tpu7x:2x2x1
jax: 0.10.0
libtpu: 0.0.40
codegen_flags: <defaults>
</compile_context>

<pallas_src>
import functools

import jax
import jax.numpy as jnp
from jax.experimental import pallas as pl
from jax.experimental.pallas import tpu as pltpu

EPS = 1e-5


# ------------------------------ kernel helpers -------------------------------
def _tree_sum(terms):
    """Balanced pairwise summation (gives the VLIW scheduler independent adds)."""
    terms = list(terms)
    while len(terms) > 1:
        nxt = [terms[i] + terms[i + 1] for i in range(0, len(terms) - 1, 2)]
        if len(terms) % 2:
            nxt.append(terms[-1])
        terms = nxt
    return terms[0]


def _bn_affine(hv, gamma, beta, inv_m):
    """Training-mode BatchNorm folded to a single FMA: returns (scale, shift).

    hv: (N, C, P); gamma/beta: (1, C, 1).  Sum and sum-of-squares share one
    lane reduction by stacking [h, h*h] along the untiled leading axis.
    """
    n = hv.shape[0]
    both = jnp.concatenate([hv, hv * hv], axis=0)              # (2N, C, P)
    r = jnp.sum(both, axis=2, keepdims=True)                   # (2N, C, 1)
    s1 = jnp.sum(r[:n], axis=0, keepdims=True)                 # (1, C, 1)
    s2 = jnp.sum(r[n:], axis=0, keepdims=True)                 # (1, C, 1)
    mean = s1 * inv_m
    var = s2 * inv_m - mean * mean                             # biased variance
    scale = jax.lax.rsqrt(var + EPS) * gamma
    shift = beta - mean * scale
    return scale, shift


# --------------------------------- kernel ------------------------------------
def _fold_bottleneck_kernel(x_ref, wa_ref, wb_ref, gb_ref, out_ref, *, h, w):
    n, cin, hw = x_ref.shape
    cw = wa_ref.shape[1]            # bottleneck width
    cout = wb_ref.shape[1]          # expansion * planes
    inv_m = 1.0 / float(n * hw)

    x = x_ref[...]                                             # (N, Cin, P)
    gb = gb_ref[...]                                           # (8, Cout, 1)

    # ---- conv1 (1x1) and shortcut conv (1x1): one hoisted sublane broadcast
    #      per input channel of x, shared by both convs; weight planes are
    #      already lane-replicated so the FMA terms are plain multiplies.
    h1_terms, sc_terms = [], []
    for i in range(cin):
        bxi = jnp.broadcast_to(x[:, i:i + 1, :], (n, cout, hw))
        h1_terms.append(bxi[:, :cw, :] * wa_ref[i])            # (N, Cw,  P)
        sc_terms.append(bxi * wb_ref[cw + i])                  # (N, Cout, P)
    h1 = _tree_sum(h1_terms)
    sc = _tree_sum(sc_terms)

    # ---- bnorm1 + ReLU (single FMA)
    s1c, s1h = _bn_affine(h1, gb[0:1, :cw, :], gb[1:2, :cw, :], inv_m)
    h1 = jnp.maximum(h1 * s1c + s1h, 0.0)

    # ---- conv2 (3x3, stride 1, pad 1).  The per-tap 1x1 contraction commutes
    #      with the lane roll and the halo mask, so contract first (broadcasts
    #      of h1's channels are shared by all 9 taps), then roll + mask.
    bh1 = [jnp.broadcast_to(h1[:, i:i + 1, :], (n, cw, hw)) for i in range(cw)]

    col = jax.lax.broadcasted_iota(jnp.int32, (n, cw, hw), 2)
    if (w & (w - 1)) == 0:                                     # power-of-two W
        wi = col & (w - 1)
        hi = col >> (w.bit_length() - 1)
    else:
        wi = col % w
        hi = col // w
    okw = {-1: wi >= 1, 0: None, 1: wi <= w - 2}
    okh = {-1: hi >= 1, 0: None, 1: hi <= h - 2}

    t = 0
    row_sums = []
    for dy in (-1, 0, 1):
        row_terms = []
        for dx in (-1, 0, 1):
            pw = _tree_sum([bh1[i] * wa_ref[cin + t * cw + i]
                            for i in range(cw)])               # (N, Cw, P)
            d = dy * w + dx
            if d != 0:
                pw = pltpu.roll(pw, (-d) % hw, axis=2)         # pw'[q] = pw[q+d]
            conds = [c for c in (okw[dx], okh[dy]) if c is not None]
            if len(conds) == 2:
                pw = jnp.where(jnp.logical_and(conds[0], conds[1]), pw, 0.0)
            elif len(conds) == 1:
                pw = jnp.where(conds[0], pw, 0.0)
            row_terms.append(pw)
            t += 1
        row_sums.append(_tree_sum(row_terms))
    h2 = _tree_sum(row_sums)

    # ---- bnorm2 + ReLU
    s2c, s2h = _bn_affine(h2, gb[2:3, :cw, :], gb[3:4, :cw, :], inv_m)
    h2 = jnp.maximum(h2 * s2c + s2h, 0.0)

    # ---- conv3 (1x1); fused bnorm3 + bnorm4 + residual + ReLU tail (one pass)
    bh2 = [jnp.broadcast_to(h2[:, i:i + 1, :], (n, cout, hw)) for i in range(cw)]
    h3 = _tree_sum([bh2[i] * wb_ref[i] for i in range(cw)])

    s3c, s3h = _bn_affine(h3, gb[4:5], gb[5:6], inv_m)
    s4c, s4h = _bn_affine(sc, gb[6:7], gb[7:8], inv_m)
    out_ref[...] = jnp.maximum(h3 * s3c + sc * s4c + (s3h + s4h), 0.0)


# --------------------------------- wrapper ------------------------------------
def fold_bottleneck_ubn(x_nchw, p):
    """Forward pass of FoldBottleneckUBN (iters=1, stride=1, shortcut present)."""
    x = x_nchw.astype(jnp.float32)
    n, cin, h, w = x.shape
    hw = h * w
    cw = p["w1"].shape[1]
    cout = p["w3"].shape[1]

    # Only the module variant exercised here is implemented.
    assert p["w2"].shape == (3, 3, cw, cw), "conv2 must be 3x3 (stride=1)"
    assert cin != cout, ("identity-shortcut variant (in_planes == 4*planes, "
                         "stride=1) is not implemented")
    assert cout >= cw

    # ---- pack parameters: two lane-replicated weight slabs + gamma/beta slab
    w2 = p["w2"].reshape(9, cw, cw)                            # (tap, ci, co)
    cols_a = [p["w1"][i] for i in range(cin)]                  # conv1 columns
    cols_a += [w2[t, i] for t in range(9) for i in range(cw)]  # conv2 columns
    wa = jnp.broadcast_to(
        jnp.stack(cols_a, axis=0).astype(jnp.float32)[:, :, None],
        (len(cols_a), cw, hw))                                 # (4+36, Cw,  P)

    cols_b = [p["w3"][i] for i in range(cw)]                   # conv3 columns
    cols_b += [p["ws"][i] for i in range(cin)]                 # shortcut columns
    wb = jnp.broadcast_to(
        jnp.stack(cols_b, axis=0).astype(jnp.float32)[:, :, None],
        (len(cols_b), cout, hw))                               # (8, Cout, P)

    def row(v):
        v = v.reshape(-1).astype(jnp.float32)
        return jnp.pad(v, (0, cout - v.shape[0]))
    gb = jnp.stack([row(p[k]) for k in
                    ("g1", "b1", "g2", "b2", "g3", "b3", "g4", "b4")],
                   axis=0)[:, :, None]                          # (8, Cout, 1)

    kernel = functools.partial(_fold_bottleneck_kernel, h=h, w=w)
    out_planes = pl.pallas_call(
        kernel,
        out_shape=jax.ShapeDtypeStruct((n, cout, hw), jnp.float32),
        in_specs=[pl.BlockSpec(memory_space=pltpu.MemorySpace.VMEM)] * 4,
        out_specs=pl.BlockSpec(memory_space=pltpu.MemorySpace.VMEM),
    )(x.reshape(n, cin, hw), wa, wb, gb)

    return out_planes.reshape(n, cout, h, w)                   # planes -> NCHW


# ---------------------------- pure-JAX reference -----------------------------
def _bn_ref(hv, gamma, beta):
    mean = hv.mean(axis=(0, 1, 2), keepdims=True)
    var = ((hv - mean) ** 2).mean(axis=(0, 1, 2), keepdims=True)
    return ((hv - mean) * jax.lax.rsqrt(var + EPS) * gamma.reshape(1, 1, 1, -1)
            + beta.reshape(1, 1, 1, -1))


def _conv_ref(x, w_hwio):
    return jax.lax.conv_general_dilated(
        x, w_hwio, window_strides=(1, 1), padding="SAME",
        dimension_numbers=("NHWC", "HWIO", "NHWC"),
        precision=jax.lax.Precision.HIGHEST)


def reference(x_nchw, p):
    x = jnp.transpose(x_nchw, (0, 2, 3, 1)).astype(jnp.float32)
    cin = x.shape[-1]
    cw = p["w1"].shape[1]
    cout = p["w3"].shape[1]
    h1 = jax.nn.relu(_bn_ref(_conv_ref(x, p["w1"].reshape(1, 1, cin, cw)),
                             p["g1"], p["b1"]))
    h2 = jax.nn.relu(_bn_ref(_conv_ref(h1, p["w2"]), p["g2"], p["b2"]))
    h3 = _bn_ref(_conv_ref(h2, p["w3"].reshape(1, 1, cw, cout)), p["g3"], p["b3"])
    sc = _bn_ref(_conv_ref(x, p["ws"].reshape(1, 1, cin, cout)), p["g4"], p["b4"])
    out = jax.nn.relu(h3 + sc)
    return jnp.transpose(out, (0, 3, 1, 2))


# ------------------------------- parameters ----------------------------------
def make_params(key, in_planes=4, planes=4, wider=1):
    expansion = 4
    width = planes * wider
    cout = expansion * planes
    ks = jax.random.split(key, 12)

    def rnd(k, shape, scale=0.2):
        return (scale * jax.random.normal(k, shape)).astype(jnp.float32)

    return dict(
        w1=rnd(ks[0], (in_planes, width)),            # conv1x1 (Cin -> width)
        g1=1.0 + rnd(ks[1], (1, width)),
        b1=rnd(ks[2], (1, width)),
        w2=rnd(ks[3], (3, 3, width, width)),          # conv3x3 (HWIO)
        g2=1.0 + rnd(ks[4], (1, width)),
        b2=rnd(ks[5], (1, width)),
        w3=rnd(ks[6], (width, cout)),                 # conv1x1 (width -> 4*planes)
        g3=1.0 + rnd(ks[7], (1, cout)),
        b3=rnd(ks[8], (1, cout)),
        ws=rnd(ks[9], (in_planes, cout)),             # shortcut conv1x1
        g4=1.0 + rnd(ks[10], (1, cout)),
        b4=rnd(ks[11], (1, cout)),
    )


if __name__ == "__main__":
    key = jax.random.PRNGKey(0)
    k_x, k_p = jax.random.split(key)

    x = jax.random.normal(k_x, (2, 4, 16, 16), dtype=jnp.float32)  # NCHW
    params = make_params(k_p, in_planes=4, planes=4, wider=1)

    fwd = jax.jit(fold_bottleneck_ubn)
    out = jax.block_until_ready(fwd(x, params))
    ref = jax.block_until_ready(reference(x, params))

    max_err = float(jnp.max(jnp.abs(out - ref)))
    if out.shape != (2, 16, 16, 16):
        raise RuntimeError(f"bad output shape: {out.shape}")
    if not (max_err < 5e-2):
        raise RuntimeError(f"mismatch vs reference, max abs err = {max_err}")
    print("KERNEL_OK")
</pallas_src>

<mosaic_0001>
module attributes {stable_mosaic.version = 11 : i64} {
  func.func @_fold_bottleneck_kernel(%arg0: memref<2x4x256xf32, #tpu.memory_space<vmem>>, %arg1: memref<40x4x256xf32, #tpu.memory_space<vmem>>, %arg2: memref<8x16x256xf32, #tpu.memory_space<vmem>>, %arg3: memref<8x16x1xf32, #tpu.memory_space<vmem>>, %arg4: memref<2x16x256xf32, #tpu.memory_space<vmem>>) attributes {dimension_semantics = [], scalar_prefetch = 0 : i64, scratch_operands = 0 : i64, tpu.core_type = #tpu.core_type<tc>} {
    %c0 = arith.constant 0 : index
    %c0_0 = arith.constant 0 : index
    %c0_1 = arith.constant 0 : index
    %0 = vector.load %arg0[%c0, %c0_0, %c0_1] : memref<2x4x256xf32, #tpu.memory_space<vmem>>, vector<2x4x256xf32>
    %c0_2 = arith.constant 0 : index
    %c0_3 = arith.constant 0 : index
    %c0_4 = arith.constant 0 : index
    %1 = vector.load %arg3[%c0_2, %c0_3, %c0_4] : memref<8x16x1xf32, #tpu.memory_space<vmem>>, vector<8x16x1xf32>
    %2 = vector.extract_strided_slice %0 {offsets = [0, 0, 0], sizes = [2, 1, 256], strides = [1, 1, 1]} : vector<2x4x256xf32> to vector<2x1x256xf32>
    %3 = vector.shape_cast %2 : vector<2x1x256xf32> to vector<2x1x256xf32>
    %4 = vector.broadcast %3 : vector<2x1x256xf32> to vector<2x16x256xf32>
    %5 = vector.extract_strided_slice %4 {offsets = [0, 0, 0], sizes = [2, 4, 256], strides = [1, 1, 1]} : vector<2x16x256xf32> to vector<2x4x256xf32>
    %c0_5 = arith.constant 0 : index
    %c0_6 = arith.constant 0 : index
    %c0_7 = arith.constant 0 : index
    %6 = vector.load %arg1[%c0_5, %c0_6, %c0_7] : memref<40x4x256xf32, #tpu.memory_space<vmem>>, vector<1x4x256xf32>
    %7 = vector.shape_cast %6 : vector<1x4x256xf32> to vector<4x256xf32>
    %8 = vector.shape_cast %7 : vector<4x256xf32> to vector<1x4x256xf32>
    %9 = vector.broadcast %8 : vector<1x4x256xf32> to vector<2x4x256xf32>
    %10 = arith.mulf %5, %9 : vector<2x4x256xf32>
    %c4 = arith.constant 4 : index
    %c0_8 = arith.constant 0 : index
    %c0_9 = arith.constant 0 : index
    %11 = vector.load %arg2[%c4, %c0_8, %c0_9] : memref<8x16x256xf32, #tpu.memory_space<vmem>>, vector<1x16x256xf32>
    %12 = vector.shape_cast %11 : vector<1x16x256xf32> to vector<16x256xf32>
    %13 = vector.shape_cast %12 : vector<16x256xf32> to vector<1x16x256xf32>
    %14 = vector.broadcast %13 : vector<1x16x256xf32> to vector<2x16x256xf32>
    %15 = arith.mulf %4, %14 : vector<2x16x256xf32>
    %16 = vector.extract_strided_slice %0 {offsets = [0, 1, 0], sizes = [2, 1, 256], strides = [1, 1, 1]} : vector<2x4x256xf32> to vector<2x1x256xf32>
    %17 = vector.shape_cast %16 : vector<2x1x256xf32> to vector<2x1x256xf32>
    %18 = vector.broadcast %17 : vector<2x1x256xf32> to vector<2x16x256xf32>
    %19 = vector.extract_strided_slice %18 {offsets = [0, 0, 0], sizes = [2, 4, 256], strides = [1, 1, 1]} : vector<2x16x256xf32> to vector<2x4x256xf32>
    %c1 = arith.constant 1 : index
    %c0_10 = arith.constant 0 : index
    %c0_11 = arith.constant 0 : index
    %20 = vector.load %arg1[%c1, %c0_10, %c0_11] : memref<40x4x256xf32, #tpu.memory_space<vmem>>, vector<1x4x256xf32>
    %21 = vector.shape_cast %20 : vector<1x4x256xf32> to vector<4x256xf32>
    %22 = vector.shape_cast %21 : vector<4x256xf32> to vector<1x4x256xf32>
    %23 = vector.broadcast %22 : vector<1x4x256xf32> to vector<2x4x256xf32>
    %24 = arith.mulf %19, %23 : vector<2x4x256xf32>
    %c5 = arith.constant 5 : index
    %c0_12 = arith.constant 0 : index
    %c0_13 = arith.constant 0 : index
    %25 = vector.load %arg2[%c5, %c0_12, %c0_13] : memref<8x16x256xf32, #tpu.memory_space<vmem>>, vector<1x16x256xf32>
    %26 = vector.shape_cast %25 : vector<1x16x256xf32> to vector<16x256xf32>
    %27 = vector.shape_cast %26 : vector<16x256xf32> to vector<1x16x256xf32>
    %28 = vector.broadcast %27 : vector<1x16x256xf32> to vector<2x16x256xf32>
    %29 = arith.mulf %18, %28 : vector<2x16x256xf32>
    %30 = vector.extract_strided_slice %0 {offsets = [0, 2, 0], sizes = [2, 1, 256], strides = [1, 1, 1]} : vector<2x4x256xf32> to vector<2x1x256xf32>
    %31 = vector.shape_cast %30 : vector<2x1x256xf32> to vector<2x1x256xf32>
    %32 = vector.broadcast %31 : vector<2x1x256xf32> to vector<2x16x256xf32>
    %33 = vector.extract_strided_slice %32 {offsets = [0, 0, 0], sizes = [2, 4, 256], strides = [1, 1, 1]} : vector<2x16x256xf32> to vector<2x4x256xf32>
    %c2 = arith.constant 2 : index
    %c0_14 = arith.constant 0 : index
    %c0_15 = arith.constant 0 : index
    %34 = vector.load %arg1[%c2, %c0_14, %c0_15] : memref<40x4x256xf32, #tpu.memory_space<vmem>>, vector<1x4x256xf32>
    %35 = vector.shape_cast %34 : vector<1x4x256xf32> to vector<4x256xf32>
    %36 = vector.shape_cast %35 : vector<4x256xf32> to vector<1x4x256xf32>
    %37 = vector.broadcast %36 : vector<1x4x256xf32> to vector<2x4x256xf32>
    %38 = arith.mulf %33, %37 : vector<2x4x256xf32>
    %c6 = arith.constant 6 : index
    %c0_16 = arith.constant 0 : index
    %c0_17 = arith.constant 0 : index
    %39 = vector.load %arg2[%c6, %c0_16, %c0_17] : memref<8x16x256xf32, #tpu.memory_space<vmem>>, vector<1x16x256xf32>
    %40 = vector.shape_cast %39 : vector<1x16x256xf32> to vector<16x256xf32>
    %41 = vector.shape_cast %40 : vector<16x256xf32> to vector<1x16x256xf32>
    %42 = vector.broadcast %41 : vector<1x16x256xf32> to vector<2x16x256xf32>
    %43 = arith.mulf %32, %42 : vector<2x16x256xf32>
    %44 = vector.extract_strided_slice %0 {offsets = [0, 3, 0], sizes = [2, 1, 256], strides = [1, 1, 1]} : vector<2x4x256xf32> to vector<2x1x256xf32>
    %45 = vector.shape_cast %44 : vector<2x1x256xf32> to vector<2x1x256xf32>
    %46 = vector.broadcast %45 : vector<2x1x256xf32> to vector<2x16x256xf32>
    %47 = vector.extract_strided_slice %46 {offsets = [0, 0, 0], sizes = [2, 4, 256], strides = [1, 1, 1]} : vector<2x16x256xf32> to vector<2x4x256xf32>
    %c3 = arith.constant 3 : index
    %c0_18 = arith.constant 0 : index
    %c0_19 = arith.constant 0 : index
    %48 = vector.load %arg1[%c3, %c0_18, %c0_19] : memref<40x4x256xf32, #tpu.memory_space<vmem>>, vector<1x4x256xf32>
    %49 = vector.shape_cast %48 : vector<1x4x256xf32> to vector<4x256xf32>
    %50 = vector.shape_cast %49 : vector<4x256xf32> to vector<1x4x256xf32>
    %51 = vector.broadcast %50 : vector<1x4x256xf32> to vector<2x4x256xf32>
    %52 = arith.mulf %47, %51 : vector<2x4x256xf32>
    %c7 = arith.constant 7 : index
    %c0_20 = arith.constant 0 : index
    %c0_21 = arith.constant 0 : index
    %53 = vector.load %arg2[%c7, %c0_20, %c0_21] : memref<8x16x256xf32, #tpu.memory_space<vmem>>, vector<1x16x256xf32>
    %54 = vector.shape_cast %53 : vector<1x16x256xf32> to vector<16x256xf32>
    %55 = vector.shape_cast %54 : vector<16x256xf32> to vector<1x16x256xf32>
    %56 = vector.broadcast %55 : vector<1x16x256xf32> to vector<2x16x256xf32>
    %57 = arith.mulf %46, %56 : vector<2x16x256xf32>
    %58 = arith.addf %10, %24 : vector<2x4x256xf32>
    %59 = arith.addf %38, %52 : vector<2x4x256xf32>
    %60 = arith.addf %58, %59 : vector<2x4x256xf32>
    %61 = arith.addf %15, %29 : vector<2x16x256xf32>
    %62 = arith.addf %43, %57 : vector<2x16x256xf32>
    %63 = arith.addf %61, %62 : vector<2x16x256xf32>
    %64 = vector.extract_strided_slice %1 {offsets = [0, 0, 0], sizes = [1, 4, 1], strides = [1, 1, 1]} : vector<8x16x1xf32> to vector<1x4x1xf32>
    %65 = vector.extract_strided_slice %1 {offsets = [1, 0, 0], sizes = [1, 4, 1], strides = [1, 1, 1]} : vector<8x16x1xf32> to vector<1x4x1xf32>
    %66 = arith.mulf %60, %60 : vector<2x4x256xf32>
    %67 = tpu.concatenate %60, %66 in 0 : vector<2x4x256xf32>, vector<2x4x256xf32> -> vector<4x4x256xf32>
    %cst = arith.constant dense<0.000000e+00> : vector<4x4xf32>
    %68 = vector.multi_reduction <add>, %67, %cst [2] : vector<4x4x256xf32> to vector<4x4xf32>
    %69 = vector.shape_cast %68 : vector<4x4xf32> to vector<4x4x1xf32>
    %70 = vector.extract_strided_slice %69 {offsets = [0, 0, 0], sizes = [2, 4, 1], strides = [1, 1, 1]} : vector<4x4x1xf32> to vector<2x4x1xf32>
    %cst_22 = arith.constant dense<0.000000e+00> : vector<4x1xf32>
    %71 = vector.multi_reduction <add>, %70, %cst_22 [0] : vector<2x4x1xf32> to vector<4x1xf32>
    %72 = vector.shape_cast %71 : vector<4x1xf32> to vector<1x4x1xf32>
    %73 = vector.extract_strided_slice %69 {offsets = [2, 0, 0], sizes = [2, 4, 1], strides = [1, 1, 1]} : vector<4x4x1xf32> to vector<2x4x1xf32>
    %cst_23 = arith.constant dense<0.000000e+00> : vector<4x1xf32>
    %74 = vector.multi_reduction <add>, %73, %cst_23 [0] : vector<2x4x1xf32> to vector<4x1xf32>
    %75 = vector.shape_cast %74 : vector<4x1xf32> to vector<1x4x1xf32>
    %cst_24 = arith.constant 0.001953125 : f32
    %76 = vector.broadcast %cst_24 : f32 to vector<1x4x1xf32>
    %77 = arith.mulf %72, %76 : vector<1x4x1xf32>
    %cst_25 = arith.constant 0.001953125 : f32
    %78 = vector.broadcast %cst_25 : f32 to vector<1x4x1xf32>
    %79 = arith.mulf %75, %78 : vector<1x4x1xf32>
    %80 = arith.mulf %77, %77 : vector<1x4x1xf32>
    %81 = arith.subf %79, %80 : vector<1x4x1xf32>
    %cst_26 = arith.constant 9.99999974E-6 : f32
    %82 = vector.broadcast %cst_26 : f32 to vector<1x4x1xf32>
    %83 = arith.addf %81, %82 : vector<1x4x1xf32>
    %84 = math.rsqrt %83 : vector<1x4x1xf32>
    %85 = arith.mulf %84, %64 : vector<1x4x1xf32>
    %86 = arith.mulf %77, %85 : vector<1x4x1xf32>
    %87 = arith.subf %65, %86 : vector<1x4x1xf32>
    %88 = vector.broadcast %85 : vector<1x4x1xf32> to vector<2x4x256xf32>
    %89 = arith.mulf %60, %88 : vector<2x4x256xf32>
    %90 = vector.broadcast %87 : vector<1x4x1xf32> to vector<2x4x256xf32>
    %91 = arith.addf %89, %90 : vector<2x4x256xf32>
    %cst_27 = arith.constant 0.000000e+00 : f32
    %92 = vector.broadcast %cst_27 : f32 to vector<2x4x256xf32>
    %93 = arith.maximumf %91, %92 : vector<2x4x256xf32>
    %94 = vector.extract_strided_slice %93 {offsets = [0, 0, 0], sizes = [2, 1, 256], strides = [1, 1, 1]} : vector<2x4x256xf32> to vector<2x1x256xf32>
    %95 = vector.shape_cast %94 : vector<2x1x256xf32> to vector<2x1x256xf32>
    %96 = vector.broadcast %95 : vector<2x1x256xf32> to vector<2x4x256xf32>
    %97 = vector.extract_strided_slice %93 {offsets = [0, 1, 0], sizes = [2, 1, 256], strides = [1, 1, 1]} : vector<2x4x256xf32> to vector<2x1x256xf32>
    %98 = vector.shape_cast %97 : vector<2x1x256xf32> to vector<2x1x256xf32>
    %99 = vector.broadcast %98 : vector<2x1x256xf32> to vector<2x4x256xf32>
    %100 = vector.extract_strided_slice %93 {offsets = [0, 2, 0], sizes = [2, 1, 256], strides = [1, 1, 1]} : vector<2x4x256xf32> to vector<2x1x256xf32>
    %101 = vector.shape_cast %100 : vector<2x1x256xf32> to vector<2x1x256xf32>
    %102 = vector.broadcast %101 : vector<2x1x256xf32> to vector<2x4x256xf32>
    %103 = vector.extract_strided_slice %93 {offsets = [0, 3, 0], sizes = [2, 1, 256], strides = [1, 1, 1]} : vector<2x4x256xf32> to vector<2x1x256xf32>
    %104 = vector.shape_cast %103 : vector<2x1x256xf32> to vector<2x1x256xf32>
    %105 = vector.broadcast %104 : vector<2x1x256xf32> to vector<2x4x256xf32>
    %106 = tpu.iota {dimensions = array<i32: 2>} : vector<2x4x256xi32>
    %c15_i32 = arith.constant 15 : i32
    %107 = vector.broadcast %c15_i32 : i32 to vector<2x4x256xi32>
    %108 = arith.andi %106, %107 : vector<2x4x256xi32>
    %c4_i32 = arith.constant 4 : i32
    %109 = vector.broadcast %c4_i32 : i32 to vector<2x4x256xi32>
    %110 = arith.shrsi %106, %109 : vector<2x4x256xi32>
    %c1_i32 = arith.constant 1 : i32
    %111 = vector.broadcast %c1_i32 : i32 to vector<2x4x256xi32>
    %112 = arith.cmpi sge, %108, %111 : vector<2x4x256xi32>
    %c14_i32 = arith.constant 14 : i32
    %113 = vector.broadcast %c14_i32 : i32 to vector<2x4x256xi32>
    %114 = arith.cmpi sle, %108, %113 : vector<2x4x256xi32>
    %c1_i32_28 = arith.constant 1 : i32
    %115 = vector.broadcast %c1_i32_28 : i32 to vector<2x4x256xi32>
    %116 = arith.cmpi sge, %110, %115 : vector<2x4x256xi32>
    %c14_i32_29 = arith.constant 14 : i32
    %117 = vector.broadcast %c14_i32_29 : i32 to vector<2x4x256xi32>
    %118 = arith.cmpi sle, %110, %117 : vector<2x4x256xi32>
    %c4_30 = arith.constant 4 : index
    %c0_31 = arith.constant 0 : index
    %c0_32 = arith.constant 0 : index
    %119 = vector.load %arg1[%c4_30, %c0_31, %c0_32] : memref<40x4x256xf32, #tpu.memory_space<vmem>>, vector<1x4x256xf32>
    %120 = vector.shape_cast %119 : vector<1x4x256xf32> to vector<4x256xf32>
    %121 = vector.shape_cast %120 : vector<4x256xf32> to vector<1x4x256xf32>
    %122 = vector.broadcast %121 : vector<1x4x256xf32> to vector<2x4x256xf32>
    %123 = arith.mulf %96, %122 : vector<2x4x256xf32>
    %c5_33 = arith.constant 5 : index
    %c0_34 = arith.constant 0 : index
    %c0_35 = arith.constant 0 : index
    %124 = vector.load %arg1[%c5_33, %c0_34, %c0_35] : memref<40x4x256xf32, #tpu.memory_space<vmem>>, vector<1x4x256xf32>
    %125 = vector.shape_cast %124 : vector<1x4x256xf32> to vector<4x256xf32>
    %126 = vector.shape_cast %125 : vector<4x256xf32> to vector<1x4x256xf32>
    %127 = vector.broadcast %126 : vector<1x4x256xf32> to vector<2x4x256xf32>
    %128 = arith.mulf %99, %127 : vector<2x4x256xf32>
    %c6_36 = arith.constant 6 : index
    %c0_37 = arith.constant 0 : index
    %c0_38 = arith.constant 0 : index
    %129 = vector.load %arg1[%c6_36, %c0_37, %c0_38] : memref<40x4x256xf32, #tpu.memory_space<vmem>>, vector<1x4x256xf32>
    %130 = vector.shape_cast %129 : vector<1x4x256xf32> to vector<4x256xf32>
    %131 = vector.shape_cast %130 : vector<4x256xf32> to vector<1x4x256xf32>
    %132 = vector.broadcast %131 : vector<1x4x256xf32> to vector<2x4x256xf32>
    %133 = arith.mulf %102, %132 : vector<2x4x256xf32>
    %c7_39 = arith.constant 7 : index
    %c0_40 = arith.constant 0 : index
    %c0_41 = arith.constant 0 : index
    %134 = vector.load %arg1[%c7_39, %c0_40, %c0_41] : memref<40x4x256xf32, #tpu.memory_space<vmem>>, vector<1x4x256xf32>
    %135 = vector.shape_cast %134 : vector<1x4x256xf32> to vector<4x256xf32>
    %136 = vector.shape_cast %135 : vector<4x256xf32> to vector<1x4x256xf32>
    %137 = vector.broadcast %136 : vector<1x4x256xf32> to vector<2x4x256xf32>
    %138 = arith.mulf %105, %137 : vector<2x4x256xf32>
    %139 = arith.addf %123, %128 : vector<2x4x256xf32>
    %140 = arith.addf %133, %138 : vector<2x4x256xf32>
    %141 = arith.addf %139, %140 : vector<2x4x256xf32>
    %c17_i32 = arith.constant 17 : i32
    %142 = tpu.dynamic_rotate %141 by %c17_i32 dim 2 : vector<2x4x256xf32>, i32 -> vector<2x4x256xf32>
    %143 = arith.andi %112, %116 : vector<2x4x256xi1>
    %cst_42 = arith.constant 0.000000e+00 : f32
    %144 = vector.broadcast %cst_42 : f32 to vector<2x4x256xf32>
    %145 = arith.select %143, %142, %144 : vector<2x4x256xi1>, vector<2x4x256xf32>
    %c8 = arith.constant 8 : index
    %c0_43 = arith.constant 0 : index
    %c0_44 = arith.constant 0 : index
    %146 = vector.load %arg1[%c8, %c0_43, %c0_44] : memref<40x4x256xf32, #tpu.memory_space<vmem>>, vector<1x4x256xf32>
    %147 = vector.shape_cast %146 : vector<1x4x256xf32> to vector<4x256xf32>
    %148 = vector.shape_cast %147 : vector<4x256xf32> to vector<1x4x256xf32>
    %149 = vector.broadcast %148 : vector<1x4x256xf32> to vector<2x4x256xf32>
    %150 = arith.mulf %96, %149 : vector<2x4x256xf32>
    %c9 = arith.constant 9 : index
    %c0_45 = arith.constant 0 : index
    %c0_46 = arith.constant 0 : index
    %151 = vector.load %arg1[%c9, %c0_45, %c0_46] : memref<40x4x256xf32, #tpu.memory_space<vmem>>, vector<1x4x256xf32>
    %152 = vector.shape_cast %151 : vector<1x4x256xf32> to vector<4x256xf32>
    %153 = vector.shape_cast %152 : vector<4x256xf32> to vector<1x4x256xf32>
    %154 = vector.broadcast %153 : vector<1x4x256xf32> to vector<2x4x256xf32>
    %155 = arith.mulf %99, %154 : vector<2x4x256xf32>
    %c10 = arith.constant 10 : index
    %c0_47 = arith.constant 0 : index
    %c0_48 = arith.constant 0 : index
    %156 = vector.load %arg1[%c10, %c0_47, %c0_48] : memref<40x4x256xf32, #tpu.memory_space<vmem>>, vector<1x4x256xf32>
    %157 = vector.shape_cast %156 : vector<1x4x256xf32> to vector<4x256xf32>
    %158 = vector.shape_cast %157 : vector<4x256xf32> to vector<1x4x256xf32>
    %159 = vector.broadcast %158 : vector<1x4x256xf32> to vector<2x4x256xf32>
    %160 = arith.mulf %102, %159 : vector<2x4x256xf32>
    %c11 = arith.constant 11 : index
    %c0_49 = arith.constant 0 : index
    %c0_50 = arith.constant 0 : index
    %161 = vector.load %arg1[%c11, %c0_49, %c0_50] : memref<40x4x256xf32, #tpu.memory_space<vmem>>, vector<1x4x256xf32>
    %162 = vector.shape_cast %161 : vector<1x4x256xf32> to vector<4x256xf32>
    %163 = vector.shape_cast %162 : vector<4x256xf32> to vector<1x4x256xf32>
    %164 = vector.broadcast %163 : vector<1x4x256xf32> to vector<2x4x256xf32>
    %165 = arith.mulf %105, %164 : vector<2x4x256xf32>
    %166 = arith.addf %150, %155 : vector<2x4x256xf32>
    %167 = arith.addf %160, %165 : vector<2x4x256xf32>
    %168 = arith.addf %166, %167 : vector<2x4x256xf32>
    %c16_i32 = arith.constant 16 : i32
    %169 = tpu.dynamic_rotate %168 by %c16_i32 dim 2 : vector<2x4x256xf32>, i32 -> vector<2x4x256xf32>
    %cst_51 = arith.constant 0.000000e+00 : f32
    %170 = vector.broadcast %cst_51 : f32 to vector<2x4x256xf32>
    %171 = arith.select %116, %169, %170 : vector<2x4x256xi1>, vector<2x4x256xf32>
    %c12 = arith.constant 12 : index
    %c0_52 = arith.constant 0 : index
    %c0_53 = arith.constant 0 : index
    %172 = vector.load %arg1[%c12, %c0_52, %c0_53] : memref<40x4x256xf32, #tpu.memory_space<vmem>>, vector<1x4x256xf32>
    %173 = vector.shape_cast %172 : vector<1x4x256xf32> to vector<4x256xf32>
    %174 = vector.shape_cast %173 : vector<4x256xf32> to vector<1x4x256xf32>
    %175 = vector.broadcast %174 : vector<1x4x256xf32> to vector<2x4x256xf32>
    %176 = arith.mulf %96, %175 : vector<2x4x256xf32>
    %c13 = arith.constant 13 : index
    %c0_54 = arith.constant 0 : index
    %c0_55 = arith.constant 0 : index
    %177 = vector.load %arg1[%c13, %c0_54, %c0_55] : memref<40x4x256xf32, #tpu.memory_space<vmem>>, vector<1x4x256xf32>
    %178 = vector.shape_cast %177 : vector<1x4x256xf32> to vector<4x256xf32>
    %179 = vector.shape_cast %178 : vector<4x256xf32> to vector<1x4x256xf32>
    %180 = vector.broadcast %179 : vector<1x4x256xf32> to vector<2x4x256xf32>
    %181 = arith.mulf %99, %180 : vector<2x4x256xf32>
    %c14 = arith.constant 14 : index
    %c0_56 = arith.constant 0 : index
    %c0_57 = arith.constant 0 : index
    %182 = vector.load %arg1[%c14, %c0_56, %c0_57] : memref<40x4x256xf32, #tpu.memory_space<vmem>>, vector<1x4x256xf32>
    %183 = vector.shape_cast %182 : vector<1x4x256xf32> to vector<4x256xf32>
    %184 = vector.shape_cast %183 : vector<4x256xf32> to vector<1x4x256xf32>
    %185 = vector.broadcast %184 : vector<1x4x256xf32> to vector<2x4x256xf32>
    %186 = arith.mulf %102, %185 : vector<2x4x256xf32>
    %c15 = arith.constant 15 : index
    %c0_58 = arith.constant 0 : index
    %c0_59 = arith.constant 0 : index
    %187 = vector.load %arg1[%c15, %c0_58, %c0_59] : memref<40x4x256xf32, #tpu.memory_space<vmem>>, vector<1x4x256xf32>
    %188 = vector.shape_cast %187 : vector<1x4x256xf32> to vector<4x256xf32>
    %189 = vector.shape_cast %188 : vector<4x256xf32> to vector<1x4x256xf32>
    %190 = vector.broadcast %189 : vector<1x4x256xf32> to vector<2x4x256xf32>
    %191 = arith.mulf %105, %190 : vector<2x4x256xf32>
    %192 = arith.addf %176, %181 : vector<2x4x256xf32>
    %193 = arith.addf %186, %191 : vector<2x4x256xf32>
    %194 = arith.addf %192, %193 : vector<2x4x256xf32>
    %c15_i32_60 = arith.constant 15 : i32
    %195 = tpu.dynamic_rotate %194 by %c15_i32_60 dim 2 : vector<2x4x256xf32>, i32 -> vector<2x4x256xf32>
    %196 = arith.andi %114, %116 : vector<2x4x256xi1>
    %cst_61 = arith.constant 0.000000e+00 : f32
    %197 = vector.broadcast %cst_61 : f32 to vector<2x4x256xf32>
    %198 = arith.select %196, %195, %197 : vector<2x4x256xi1>, vector<2x4x256xf32>
    %199 = arith.addf %145, %171 : vector<2x4x256xf32>
    %200 = arith.addf %199, %198 : vector<2x4x256xf32>
    %c16 = arith.constant 16 : index
    %c0_62 = arith.constant 0 : index
    %c0_63 = arith.constant 0 : index
    %201 = vector.load %arg1[%c16, %c0_62, %c0_63] : memref<40x4x256xf32, #tpu.memory_space<vmem>>, vector<1x4x256xf32>
    %202 = vector.shape_cast %201 : vector<1x4x256xf32> to vector<4x256xf32>
    %203 = vector.shape_cast %202 : vector<4x256xf32> to vector<1x4x256xf32>
    %204 = vector.broadcast %203 : vector<1x4x256xf32> to vector<2x4x256xf32>
    %205 = arith.mulf %96, %204 : vector<2x4x256xf32>
    %c17 = arith.constant 17 : index
    %c0_64 = arith.constant 0 : index
    %c0_65 = arith.constant 0 : index
    %206 = vector.load %arg1[%c17, %c0_64, %c0_65] : memref<40x4x256xf32, #tpu.memory_space<vmem>>, vector<1x4x256xf32>
    %207 = vector.shape_cast %206 : vector<1x4x256xf32> to vector<4x256xf32>
    %208 = vector.shape_cast %207 : vector<4x256xf32> to vector<1x4x256xf32>
    %209 = vector.broadcast %208 : vector<1x4x256xf32> to vector<2x4x256xf32>
    %210 = arith.mulf %99, %209 : vector<2x4x256xf32>
    %c18 = arith.constant 18 : index
    %c0_66 = arith.constant 0 : index
    %c0_67 = arith.constant 0 : index
    %211 = vector.load %arg1[%c18, %c0_66, %c0_67] : memref<40x4x256xf32, #tpu.memory_space<vmem>>, vector<1x4x256xf32>
    %212 = vector.shape_cast %211 : vector<1x4x256xf32> to vector<4x256xf32>
    %213 = vector.shape_cast %212 : vector<4x256xf32> to vector<1x4x256xf32>
    %214 = vector.broadcast %213 : vector<1x4x256xf32> to vector<2x4x256xf32>
    %215 = arith.mulf %102, %214 : vector<2x4x256xf32>
    %c19 = arith.constant 19 : index
    %c0_68 = arith.constant 0 : index
    %c0_69 = arith.constant 0 : index
    %216 = vector.load %arg1[%c19, %c0_68, %c0_69] : memref<40x4x256xf32, #tpu.memory_space<vmem>>, vector<1x4x256xf32>
    %217 = vector.shape_cast %216 : vector<1x4x256xf32> to vector<4x256xf32>
    %218 = vector.shape_cast %217 : vector<4x256xf32> to vector<1x4x256xf32>
    %219 = vector.broadcast %218 : vector<1x4x256xf32> to vector<2x4x256xf32>
    %220 = arith.mulf %105, %219 : vector<2x4x256xf32>
    %221 = arith.addf %205, %210 : vector<2x4x256xf32>
    %222 = arith.addf %215, %220 : vector<2x4x256xf32>
    %223 = arith.addf %221, %222 : vector<2x4x256xf32>
    %c1_i32_70 = arith.constant 1 : i32
    %224 = tpu.dynamic_rotate %223 by %c1_i32_70 dim 2 : vector<2x4x256xf32>, i32 -> vector<2x4x256xf32>
    %cst_71 = arith.constant 0.000000e+00 : f32
    %225 = vector.broadcast %cst_71 : f32 to vector<2x4x256xf32>
    %226 = arith.select %112, %224, %225 : vector<2x4x256xi1>, vector<2x4x256xf32>
    %c20 = arith.constant 20 : index
    %c0_72 = arith.constant 0 : index
    %c0_73 = arith.constant 0 : index
    %227 = vector.load %arg1[%c20, %c0_72, %c0_73] : memref<40x4x256xf32, #tpu.memory_space<vmem>>, vector<1x4x256xf32>
    %228 = vector.shape_cast %227 : vector<1x4x256xf32> to vector<4x256xf32>
    %229 = vector.shape_cast %228 : vector<4x256xf32> to vector<1x4x256xf32>
    %230 = vector.broadcast %229 : vector<1x4x256xf32> to vector<2x4x256xf32>
    %231 = arith.mulf %96, %230 : vector<2x4x256xf32>
    %c21 = arith.constant 21 : index
    %c0_74 = arith.constant 0 : index
    %c0_75 = arith.constant 0 : index
    %232 = vector.load %arg1[%c21, %c0_74, %c0_75] : memref<40x4x256xf32, #tpu.memory_space<vmem>>, vector<1x4x256xf32>
    %233 = vector.shape_cast %232 : vector<1x4x256xf32> to vector<4x256xf32>
    %234 = vector.shape_cast %233 : vector<4x256xf32> to vector<1x4x256xf32>
    %235 = vector.broadcast %234 : vector<1x4x256xf32> to vector<2x4x256xf32>
    %236 = arith.mulf %99, %235 : vector<2x4x256xf32>
    %c22 = arith.constant 22 : index
    %c0_76 = arith.constant 0 : index
    %c0_77 = arith.constant 0 : index
    %237 = vector.load %arg1[%c22, %c0_76, %c0_77] : memref<40x4x256xf32, #tpu.memory_space<vmem>>, vector<1x4x256xf32>
    %238 = vector.shape_cast %237 : vector<1x4x256xf32> to vector<4x256xf32>
    %239 = vector.shape_cast %238 : vector<4x256xf32> to vector<1x4x256xf32>
    %240 = vector.broadcast %239 : vector<1x4x256xf32> to vector<2x4x256xf32>
    %241 = arith.mulf %102, %240 : vector<2x4x256xf32>
    %c23 = arith.constant 23 : index
    %c0_78 = arith.constant 0 : index
    %c0_79 = arith.constant 0 : index
    %242 = vector.load %arg1[%c23, %c0_78, %c0_79] : memref<40x4x256xf32, #tpu.memory_space<vmem>>, vector<1x4x256xf32>
    %243 = vector.shape_cast %242 : vector<1x4x256xf32> to vector<4x256xf32>
    %244 = vector.shape_cast %243 : vector<4x256xf32> to vector<1x4x256xf32>
    %245 = vector.broadcast %244 : vector<1x4x256xf32> to vector<2x4x256xf32>
    %246 = arith.mulf %105, %245 : vector<2x4x256xf32>
    %247 = arith.addf %231, %236 : vector<2x4x256xf32>
    %248 = arith.addf %241, %246 : vector<2x4x256xf32>
    %249 = arith.addf %247, %248 : vector<2x4x256xf32>
    %c24 = arith.constant 24 : index
    %c0_80 = arith.constant 0 : index
    %c0_81 = arith.constant 0 : index
    %250 = vector.load %arg1[%c24, %c0_80, %c0_81] : memref<40x4x256xf32, #tpu.memory_space<vmem>>, vector<1x4x256xf32>
    %251 = vector.shape_cast %250 : vector<1x4x256xf32> to vector<4x256xf32>
    %252 = vector.shape_cast %251 : vector<4x256xf32> to vector<1x4x256xf32>
    %253 = vector.broadcast %252 : vector<1x4x256xf32> to vector<2x4x256xf32>
    %254 = arith.mulf %96, %253 : vector<2x4x256xf32>
    %c25 = arith.constant 25 : index
    %c0_82 = arith.constant 0 : index
    %c0_83 = arith.constant 0 : index
    %255 = vector.load %arg1[%c25, %c0_82, %c0_83] : memref<40x4x256xf32, #tpu.memory_space<vmem>>, vector<1x4x256xf32>
    %256 = vector.shape_cast %255 : vector<1x4x256xf32> to vector<4x256xf32>
    %257 = vector.shape_cast %256 : vector<4x256xf32> to vector<1x4x256xf32>
    %258 = vector.broadcast %257 : vector<1x4x256xf32> to vector<2x4x256xf32>
    %259 = arith.mulf %99, %258 : vector<2x4x256xf32>
    %c26 = arith.constant 26 : index
    %c0_84 = arith.constant 0 : index
    %c0_85 = arith.constant 0 : index
    %260 = vector.load %arg1[%c26, %c0_84, %c0_85] : memref<40x4x256xf32, #tpu.memory_space<vmem>>, vector<1x4x256xf32>
    %261 = vector.shape_cast %260 : vector<1x4x256xf32> to vector<4x256xf32>
    %262 = vector.shape_cast %261 : vector<4x256xf32> to vector<1x4x256xf32>
    %263 = vector.broadcast %262 : vector<1x4x256xf32> to vector<2x4x256xf32>
    %264 = arith.mulf %102, %263 : vector<2x4x256xf32>
    %c27 = arith.constant 27 : index
    %c0_86 = arith.constant 0 : index
    %c0_87 = arith.constant 0 : index
    %265 = vector.load %arg1[%c27, %c0_86, %c0_87] : memref<40x4x256xf32, #tpu.memory_space<vmem>>, vector<1x4x256xf32>
    %266 = vector.shape_cast %265 : vector<1x4x256xf32> to vector<4x256xf32>
    %267 = vector.shape_cast %266 : vector<4x256xf32> to vector<1x4x256xf32>
    %268 = vector.broadcast %267 : vector<1x4x256xf32> to vector<2x4x256xf32>
    %269 = arith.mulf %105, %268 : vector<2x4x256xf32>
    %270 = arith.addf %254, %259 : vector<2x4x256xf32>
    %271 = arith.addf %264, %269 : vector<2x4x256xf32>
    %272 = arith.addf %270, %271 : vector<2x4x256xf32>
    %c255_i32 = arith.constant 255 : i32
    %273 = tpu.dynamic_rotate %272 by %c255_i32 dim 2 : vector<2x4x256xf32>, i32 -> vector<2x4x256xf32>
    %cst_88 = arith.constant 0.000000e+00 : f32
    %274 = vector.broadcast %cst_88 : f32 to vector<2x4x256xf32>
    %275 = arith.select %114, %273, %274 : vector<2x4x256xi1>, vector<2x4x256xf32>
    %276 = arith.addf %226, %249 : vector<2x4x256xf32>
    %277 = arith.addf %276, %275 : vector<2x4x256xf32>
    %c28 = arith.constant 28 : index
    %c0_89 = arith.constant 0 : index
    %c0_90 = arith.constant 0 : index
    %278 = vector.load %arg1[%c28, %c0_89, %c0_90] : memref<40x4x256xf32, #tpu.memory_space<vmem>>, vector<1x4x256xf32>
    %279 = vector.shape_cast %278 : vector<1x4x256xf32> to vector<4x256xf32>
    %280 = vector.shape_cast %279 : vector<4x256xf32> to vector<1x4x256xf32>
    %281 = vector.broadcast %280 : vector<1x4x256xf32> to vector<2x4x256xf32>
    %282 = arith.mulf %96, %281 : vector<2x4x256xf32>
    %c29 = arith.constant 29 : index
    %c0_91 = arith.constant 0 : index
    %c0_92 = arith.constant 0 : index
    %283 = vector.load %arg1[%c29, %c0_91, %c0_92] : memref<40x4x256xf32, #tpu.memory_space<vmem>>, vector<1x4x256xf32>
    %284 = vector.shape_cast %283 : vector<1x4x256xf32> to vector<4x256xf32>
    %285 = vector.shape_cast %284 : vector<4x256xf32> to vector<1x4x256xf32>
    %286 = vector.broadcast %285 : vector<1x4x256xf32> to vector<2x4x256xf32>
    %287 = arith.mulf %99, %286 : vector<2x4x256xf32>
    %c30 = arith.constant 30 : index
    %c0_93 = arith.constant 0 : index
    %c0_94 = arith.constant 0 : index
    %288 = vector.load %arg1[%c30, %c0_93, %c0_94] : memref<40x4x256xf32, #tpu.memory_space<vmem>>, vector<1x4x256xf32>
    %289 = vector.shape_cast %288 : vector<1x4x256xf32> to vector<4x256xf32>
    %290 = vector.shape_cast %289 : vector<4x256xf32> to vector<1x4x256xf32>
    %291 = vector.broadcast %290 : vector<1x4x256xf32> to vector<2x4x256xf32>
    %292 = arith.mulf %102, %291 : vector<2x4x256xf32>
    %c31 = arith.constant 31 : index
    %c0_95 = arith.constant 0 : index
    %c0_96 = arith.constant 0 : index
    %293 = vector.load %arg1[%c31, %c0_95, %c0_96] : memref<40x4x256xf32, #tpu.memory_space<vmem>>, vector<1x4x256xf32>
    %294 = vector.shape_cast %293 : vector<1x4x256xf32> to vector<4x256xf32>
    %295 = vector.shape_cast %294 : vector<4x256xf32> to vector<1x4x256xf32>
    %296 = vector.broadcast %295 : vector<1x4x256xf32> to vector<2x4x256xf32>
    %297 = arith.mulf %105, %296 : vector<2x4x256xf32>
    %298 = arith.addf %282, %287 : vector<2x4x256xf32>
    %299 = arith.addf %292, %297 : vector<2x4x256xf32>
    %300 = arith.addf %298, %299 : vector<2x4x256xf32>
    %c241_i32 = arith.constant 241 : i32
    %301 = tpu.dynamic_rotate %300 by %c241_i32 dim 2 : vector<2x4x256xf32>, i32 -> vector<2x4x256xf32>
    %302 = arith.andi %112, %118 : vector<2x4x256xi1>
    %cst_97 = arith.constant 0.000000e+00 : f32
    %303 = vector.broadcast %cst_97 : f32 to vector<2x4x256xf32>
    %304 = arith.select %302, %301, %303 : vector<2x4x256xi1>, vector<2x4x256xf32>
    %c32 = arith.constant 32 : index
    %c0_98 = arith.constant 0 : index
    %c0_99 = arith.constant 0 : index
    %305 = vector.load %arg1[%c32, %c0_98, %c0_99] : memref<40x4x256xf32, #tpu.memory_space<vmem>>, vector<1x4x256xf32>
    %306 = vector.shape_cast %305 : vector<1x4x256xf32> to vector<4x256xf32>
    %307 = vector.shape_cast %306 : vector<4x256xf32> to vector<1x4x256xf32>
    %308 = vector.broadcast %307 : vector<1x4x256xf32> to vector<2x4x256xf32>
    %309 = arith.mulf %96, %308 : vector<2x4x256xf32>
    %c33 = arith.constant 33 : index
    %c0_100 = arith.constant 0 : index
    %c0_101 = arith.constant 0 : index
    %310 = vector.load %arg1[%c33, %c0_100, %c0_101] : memref<40x4x256xf32, #tpu.memory_space<vmem>>, vector<1x4x256xf32>
    %311 = vector.shape_cast %310 : vector<1x4x256xf32> to vector<4x256xf32>
    %312 = vector.shape_cast %311 : vector<4x256xf32> to vector<1x4x256xf32>
    %313 = vector.broadcast %312 : vector<1x4x256xf32> to vector<2x4x256xf32>
    %314 = arith.mulf %99, %313 : vector<2x4x256xf32>
    %c34 = arith.constant 34 : index
    %c0_102 = arith.constant 0 : index
    %c0_103 = arith.constant 0 : index
    %315 = vector.load %arg1[%c34, %c0_102, %c0_103] : memref<40x4x256xf32, #tpu.memory_space<vmem>>, vector<1x4x256xf32>
    %316 = vector.shape_cast %315 : vector<1x4x256xf32> to vector<4x256xf32>
    %317 = vector.shape_cast %316 : vector<4x256xf32> to vector<1x4x256xf32>
    %318 = vector.broadcast %317 : vector<1x4x256xf32> to vector<2x4x256xf32>
    %319 = arith.mulf %102, %318 : vector<2x4x256xf32>
    %c35 = arith.constant 35 : index
    %c0_104 = arith.constant 0 : index
    %c0_105 = arith.constant 0 : index
    %320 = vector.load %arg1[%c35, %c0_104, %c0_105] : memref<40x4x256xf32, #tpu.memory_space<vmem>>, vector<1x4x256xf32>
    %321 = vector.shape_cast %320 : vector<1x4x256xf32> to vector<4x256xf32>
    %322 = vector.shape_cast %321 : vector<4x256xf32> to vector<1x4x256xf32>
    %323 = vector.broadcast %322 : vector<1x4x256xf32> to vector<2x4x256xf32>
    %324 = arith.mulf %105, %323 : vector<2x4x256xf32>
    %325 = arith.addf %309, %314 : vector<2x4x256xf32>
    %326 = arith.addf %319, %324 : vector<2x4x256xf32>
    %327 = arith.addf %325, %326 : vector<2x4x256xf32>
    %c240_i32 = arith.constant 240 : i32
    %328 = tpu.dynamic_rotate %327 by %c240_i32 dim 2 : vector<2x4x256xf32>, i32 -> vector<2x4x256xf32>
    %cst_106 = arith.constant 0.000000e+00 : f32
    %329 = vector.broadcast %cst_106 : f32 to vector<2x4x256xf32>
    %330 = arith.select %118, %328, %329 : vector<2x4x256xi1>, vector<2x4x256xf32>
    %c36 = arith.constant 36 : index
    %c0_107 = arith.constant 0 : index
    %c0_108 = arith.constant 0 : index
    %331 = vector.load %arg1[%c36, %c0_107, %c0_108] : memref<40x4x256xf32, #tpu.memory_space<vmem>>, vector<1x4x256xf32>
    %332 = vector.shape_cast %331 : vector<1x4x256xf32> to vector<4x256xf32>
    %333 = vector.shape_cast %332 : vector<4x256xf32> to vector<1x4x256xf32>
    %334 = vector.broadcast %333 : vector<1x4x256xf32> to vector<2x4x256xf32>
    %335 = arith.mulf %96, %334 : vector<2x4x256xf32>
    %c37 = arith.constant 37 : index
    %c0_109 = arith.constant 0 : index
    %c0_110 = arith.constant 0 : index
    %336 = vector.load %arg1[%c37, %c0_109, %c0_110] : memref<40x4x256xf32, #tpu.memory_space<vmem>>, vector<1x4x256xf32>
    %337 = vector.shape_cast %336 : vector<1x4x256xf32> to vector<4x256xf32>
    %338 = vector.shape_cast %337 : vector<4x256xf32> to vector<1x4x256xf32>
    %339 = vector.broadcast %338 : vector<1x4x256xf32> to vector<2x4x256xf32>
    %340 = arith.mulf %99, %339 : vector<2x4x256xf32>
    %c38 = arith.constant 38 : index
    %c0_111 = arith.constant 0 : index
    %c0_112 = arith.constant 0 : index
    %341 = vector.load %arg1[%c38, %c0_111, %c0_112] : memref<40x4x256xf32, #tpu.memory_space<vmem>>, vector<1x4x256xf32>
    %342 = vector.shape_cast %341 : vector<1x4x256xf32> to vector<4x256xf32>
    %343 = vector.shape_cast %342 : vector<4x256xf32> to vector<1x4x256xf32>
    %344 = vector.broadcast %343 : vector<1x4x256xf32> to vector<2x4x256xf32>
    %345 = arith.mulf %102, %344 : vector<2x4x256xf32>
    %c39 = arith.constant 39 : index
    %c0_113 = arith.constant 0 : index
    %c0_114 = arith.constant 0 : index
    %346 = vector.load %arg1[%c39, %c0_113, %c0_114] : memref<40x4x256xf32, #tpu.memory_space<vmem>>, vector<1x4x256xf32>
    %347 = vector.shape_cast %346 : vector<1x4x256xf32> to vector<4x256xf32>
    %348 = vector.shape_cast %347 : vector<4x256xf32> to vector<1x4x256xf32>
    %349 = vector.broadcast %348 : vector<1x4x256xf32> to vector<2x4x256xf32>
    %350 = arith.mulf %105, %349 : vector<2x4x256xf32>
    %351 = arith.addf %335, %340 : vector<2x4x256xf32>
    %352 = arith.addf %345, %350 : vector<2x4x256xf32>
    %353 = arith.addf %351, %352 : vector<2x4x256xf32>
    %c239_i32 = arith.constant 239 : i32
    %354 = tpu.dynamic_rotate %353 by %c239_i32 dim 2 : vector<2x4x256xf32>, i32 -> vector<2x4x256xf32>
    %355 = arith.andi %114, %118 : vector<2x4x256xi1>
    %cst_115 = arith.constant 0.000000e+00 : f32
    %356 = vector.broadcast %cst_115 : f32 to vector<2x4x256xf32>
    %357 = arith.select %355, %354, %356 : vector<2x4x256xi1>, vector<2x4x256xf32>
    %358 = arith.addf %304, %330 : vector<2x4x256xf32>
    %359 = arith.addf %358, %357 : vector<2x4x256xf32>
    %360 = arith.addf %200, %277 : vector<2x4x256xf32>
    %361 = arith.addf %360, %359 : vector<2x4x256xf32>
    %362 = vector.extract_strided_slice %1 {offsets = [2, 0, 0], sizes = [1, 4, 1], strides = [1, 1, 1]} : vector<8x16x1xf32> to vector<1x4x1xf32>
    %363 = vector.extract_strided_slice %1 {offsets = [3, 0, 0], sizes = [1, 4, 1], strides = [1, 1, 1]} : vector<8x16x1xf32> to vector<1x4x1xf32>
    %364 = arith.mulf %361, %361 : vector<2x4x256xf32>
    %365 = tpu.concatenate %361, %364 in 0 : vector<2x4x256xf32>, vector<2x4x256xf32> -> vector<4x4x256xf32>
    %cst_116 = arith.constant dense<0.000000e+00> : vector<4x4xf32>
    %366 = vector.multi_reduction <add>, %365, %cst_116 [2] : vector<4x4x256xf32> to vector<4x4xf32>
    %367 = vector.shape_cast %366 : vector<4x4xf32> to vector<4x4x1xf32>
    %368 = vector.extract_strided_slice %367 {offsets = [0, 0, 0], sizes = [2, 4, 1], strides = [1, 1, 1]} : vector<4x4x1xf32> to vector<2x4x1xf32>
    %cst_117 = arith.constant dense<0.000000e+00> : vector<4x1xf32>
    %369 = vector.multi_reduction <add>, %368, %cst_117 [0] : vector<2x4x1xf32> to vector<4x1xf32>
    %370 = vector.shape_cast %369 : vector<4x1xf32> to vector<1x4x1xf32>
    %371 = vector.extract_strided_slice %367 {offsets = [2, 0, 0], sizes = [2, 4, 1], strides = [1, 1, 1]} : vector<4x4x1xf32> to vector<2x4x1xf32>
    %cst_118 = arith.constant dense<0.000000e+00> : vector<4x1xf32>
    %372 = vector.multi_reduction <add>, %371, %cst_118 [0] : vector<2x4x1xf32> to vector<4x1xf32>
    %373 = vector.shape_cast %372 : vector<4x1xf32> to vector<1x4x1xf32>
    %cst_119 = arith.constant 0.001953125 : f32
    %374 = vector.broadcast %cst_119 : f32 to vector<1x4x1xf32>
    %375 = arith.mulf %370, %374 : vector<1x4x1xf32>
    %cst_120 = arith.constant 0.001953125 : f32
    %376 = vector.broadcast %cst_120 : f32 to vector<1x4x1xf32>
    %377 = arith.mulf %373, %376 : vector<1x4x1xf32>
    %378 = arith.mulf %375, %375 : vector<1x4x1xf32>
    %379 = arith.subf %377, %378 : vector<1x4x1xf32>
    %cst_121 = arith.constant 9.99999974E-6 : f32
    %380 = vector.broadcast %cst_121 : f32 to vector<1x4x1xf32>
    %381 = arith.addf %379, %380 : vector<1x4x1xf32>
    %382 = math.rsqrt %381 : vector<1x4x1xf32>
    %383 = arith.mulf %382, %362 : vector<1x4x1xf32>
    %384 = arith.mulf %375, %383 : vector<1x4x1xf32>
    %385 = arith.subf %363, %384 : vector<1x4x1xf32>
    %386 = vector.broadcast %383 : vector<1x4x1xf32> to vector<2x4x256xf32>
    %387 = arith.mulf %361, %386 : vector<2x4x256xf32>
    %388 = vector.broadcast %385 : vector<1x4x1xf32> to vector<2x4x256xf32>
    %389 = arith.addf %387, %388 : vector<2x4x256xf32>
    %cst_122 = arith.constant 0.000000e+00 : f32
    %390 = vector.broadcast %cst_122 : f32 to vector<2x4x256xf32>
    %391 = arith.maximumf %389, %390 : vector<2x4x256xf32>
    %392 = vector.extract_strided_slice %391 {offsets = [0, 0, 0], sizes = [2, 1, 256], strides = [1, 1, 1]} : vector<2x4x256xf32> to vector<2x1x256xf32>
    %393 = vector.shape_cast %392 : vector<2x1x256xf32> to vector<2x1x256xf32>
    %394 = vector.broadcast %393 : vector<2x1x256xf32> to vector<2x16x256xf32>
    %395 = vector.extract_strided_slice %391 {offsets = [0, 1, 0], sizes = [2, 1, 256], strides = [1, 1, 1]} : vector<2x4x256xf32> to vector<2x1x256xf32>
    %396 = vector.shape_cast %395 : vector<2x1x256xf32> to vector<2x1x256xf32>
    %397 = vector.broadcast %396 : vector<2x1x256xf32> to vector<2x16x256xf32>
    %398 = vector.extract_strided_slice %391 {offsets = [0, 2, 0], sizes = [2, 1, 256], strides = [1, 1, 1]} : vector<2x4x256xf32> to vector<2x1x256xf32>
    %399 = vector.shape_cast %398 : vector<2x1x256xf32> to vector<2x1x256xf32>
    %400 = vector.broadcast %399 : vector<2x1x256xf32> to vector<2x16x256xf32>
    %401 = vector.extract_strided_slice %391 {offsets = [0, 3, 0], sizes = [2, 1, 256], strides = [1, 1, 1]} : vector<2x4x256xf32> to vector<2x1x256xf32>
    %402 = vector.shape_cast %401 : vector<2x1x256xf32> to vector<2x1x256xf32>
    %403 = vector.broadcast %402 : vector<2x1x256xf32> to vector<2x16x256xf32>
    %c0_123 = arith.constant 0 : index
    %c0_124 = arith.constant 0 : index
    %c0_125 = arith.constant 0 : index
    %404 = vector.load %arg2[%c0_123, %c0_124, %c0_125] : memref<8x16x256xf32, #tpu.memory_space<vmem>>, vector<1x16x256xf32>
    %405 = vector.shape_cast %404 : vector<1x16x256xf32> to vector<16x256xf32>
    %406 = vector.shape_cast %405 : vector<16x256xf32> to vector<1x16x256xf32>
    %407 = vector.broadcast %406 : vector<1x16x256xf32> to vector<2x16x256xf32>
    %408 = arith.mulf %394, %407 : vector<2x16x256xf32>
    %c1_126 = arith.constant 1 : index
    %c0_127 = arith.constant 0 : index
    %c0_128 = arith.constant 0 : index
    %409 = vector.load %arg2[%c1_126, %c0_127, %c0_128] : memref<8x16x256xf32, #tpu.memory_space<vmem>>, vector<1x16x256xf32>
    %410 = vector.shape_cast %409 : vector<1x16x256xf32> to vector<16x256xf32>
    %411 = vector.shape_cast %410 : vector<16x256xf32> to vector<1x16x256xf32>
    %412 = vector.broadcast %411 : vector<1x16x256xf32> to vector<2x16x256xf32>
    %413 = arith.mulf %397, %412 : vector<2x16x256xf32>
    %c2_129 = arith.constant 2 : index
    %c0_130 = arith.constant 0 : index
    %c0_131 = arith.constant 0 : index
    %414 = vector.load %arg2[%c2_129, %c0_130, %c0_131] : memref<8x16x256xf32, #tpu.memory_space<vmem>>, vector<1x16x256xf32>
    %415 = vector.shape_cast %414 : vector<1x16x256xf32> to vector<16x256xf32>
    %416 = vector.shape_cast %415 : vector<16x256xf32> to vector<1x16x256xf32>
    %417 = vector.broadcast %416 : vector<1x16x256xf32> to vector<2x16x256xf32>
    %418 = arith.mulf %400, %417 : vector<2x16x256xf32>
    %c3_132 = arith.constant 3 : index
    %c0_133 = arith.constant 0 : index
    %c0_134 = arith.constant 0 : index
    %419 = vector.load %arg2[%c3_132, %c0_133, %c0_134] : memref<8x16x256xf32, #tpu.memory_space<vmem>>, vector<1x16x256xf32>
    %420 = vector.shape_cast %419 : vector<1x16x256xf32> to vector<16x256xf32>
    %421 = vector.shape_cast %420 : vector<16x256xf32> to vector<1x16x256xf32>
    %422 = vector.broadcast %421 : vector<1x16x256xf32> to vector<2x16x256xf32>
    %423 = arith.mulf %403, %422 : vector<2x16x256xf32>
    %424 = arith.addf %408, %413 : vector<2x16x256xf32>
    %425 = arith.addf %418, %423 : vector<2x16x256xf32>
    %426 = arith.addf %424, %425 : vector<2x16x256xf32>
    %427 = vector.extract_strided_slice %1 {offsets = [4, 0, 0], sizes = [1, 16, 1], strides = [1, 1, 1]} : vector<8x16x1xf32> to vector<1x16x1xf32>
    %428 = vector.extract_strided_slice %1 {offsets = [5, 0, 0], sizes = [1, 16, 1], strides = [1, 1, 1]} : vector<8x16x1xf32> to vector<1x16x1xf32>
    %429 = arith.mulf %426, %426 : vector<2x16x256xf32>
    %430 = tpu.concatenate %426, %429 in 0 : vector<2x16x256xf32>, vector<2x16x256xf32> -> vector<4x16x256xf32>
    %cst_135 = arith.constant dense<0.000000e+00> : vector<4x16xf32>
    %431 = vector.multi_reduction <add>, %430, %cst_135 [2] : vector<4x16x256xf32> to vector<4x16xf32>
    %432 = vector.shape_cast %431 : vector<4x16xf32> to vector<4x16x1xf32>
    %433 = vector.extract_strided_slice %432 {offsets = [0, 0, 0], sizes = [2, 16, 1], strides = [1, 1, 1]} : vector<4x16x1xf32> to vector<2x16x1xf32>
    %cst_136 = arith.constant dense<0.000000e+00> : vector<16x1xf32>
    %434 = vector.multi_reduction <add>, %433, %cst_136 [0] : vector<2x16x1xf32> to vector<16x1xf32>
    %435 = vector.shape_cast %434 : vector<16x1xf32> to vector<1x16x1xf32>
    %436 = vector.extract_strided_slice %432 {offsets = [2, 0, 0], sizes = [2, 16, 1], strides = [1, 1, 1]} : vector<4x16x1xf32> to vector<2x16x1xf32>
    %cst_137 = arith.constant dense<0.000000e+00> : vector<16x1xf32>
    %437 = vector.multi_reduction <add>, %436, %cst_137 [0] : vector<2x16x1xf32> to vector<16x1xf32>
    %438 = vector.shape_cast %437 : vector<16x1xf32> to vector<1x16x1xf32>
    %cst_138 = arith.constant 0.001953125 : f32
    %439 = vector.broadcast %cst_138 : f32 to vector<1x16x1xf32>
    %440 = arith.mulf %435, %439 : vector<1x16x1xf32>
    %cst_139 = arith.constant 0.001953125 : f32
    %441 = vector.broadcast %cst_139 : f32 to vector<1x16x1xf32>
    %442 = arith.mulf %438, %441 : vector<1x16x1xf32>
    %443 = arith.mulf %440, %440 : vector<1x16x1xf32>
    %444 = arith.subf %442, %443 : vector<1x16x1xf32>
    %cst_140 = arith.constant 9.99999974E-6 : f32
    %445 = vector.broadcast %cst_140 : f32 to vector<1x16x1xf32>
    %446 = arith.addf %444, %445 : vector<1x16x1xf32>
    %447 = math.rsqrt %446 : vector<1x16x1xf32>
    %448 = arith.mulf %447, %427 : vector<1x16x1xf32>
    %449 = arith.mulf %440, %448 : vector<1x16x1xf32>
    %450 = arith.subf %428, %449 : vector<1x16x1xf32>
    %451 = vector.extract_strided_slice %1 {offsets = [6, 0, 0], sizes = [1, 16, 1], strides = [1, 1, 1]} : vector<8x16x1xf32> to vector<1x16x1xf32>
    %452 = vector.extract_strided_slice %1 {offsets = [7, 0, 0], sizes = [1, 16, 1], strides = [1, 1, 1]} : vector<8x16x1xf32> to vector<1x16x1xf32>
    %453 = arith.mulf %63, %63 : vector<2x16x256xf32>
    %454 = tpu.concatenate %63, %453 in 0 : vector<2x16x256xf32>, vector<2x16x256xf32> -> vector<4x16x256xf32>
    %cst_141 = arith.constant dense<0.000000e+00> : vector<4x16xf32>
    %455 = vector.multi_reduction <add>, %454, %cst_141 [2] : vector<4x16x256xf32> to vector<4x16xf32>
    %456 = vector.shape_cast %455 : vector<4x16xf32> to vector<4x16x1xf32>
    %457 = vector.extract_strided_slice %456 {offsets = [0, 0, 0], sizes = [2, 16, 1], strides = [1, 1, 1]} : vector<4x16x1xf32> to vector<2x16x1xf32>
    %cst_142 = arith.constant dense<0.000000e+00> : vector<16x1xf32>
    %458 = vector.multi_reduction <add>, %457, %cst_142 [0] : vector<2x16x1xf32> to vector<16x1xf32>
    %459 = vector.shape_cast %458 : vector<16x1xf32> to vector<1x16x1xf32>
    %460 = vector.extract_strided_slice %456 {offsets = [2, 0, 0], sizes = [2, 16, 1], strides = [1, 1, 1]} : vector<4x16x1xf32> to vector<2x16x1xf32>
    %cst_143 = arith.constant dense<0.000000e+00> : vector<16x1xf32>
    %461 = vector.multi_reduction <add>, %460, %cst_143 [0] : vector<2x16x1xf32> to vector<16x1xf32>
    %462 = vector.shape_cast %461 : vector<16x1xf32> to vector<1x16x1xf32>
    %cst_144 = arith.constant 0.001953125 : f32
    %463 = vector.broadcast %cst_144 : f32 to vector<1x16x1xf32>
    %464 = arith.mulf %459, %463 : vector<1x16x1xf32>
    %cst_145 = arith.constant 0.001953125 : f32
    %465 = vector.broadcast %cst_145 : f32 to vector<1x16x1xf32>
    %466 = arith.mulf %462, %465 : vector<1x16x1xf32>
    %467 = arith.mulf %464, %464 : vector<1x16x1xf32>
    %468 = arith.subf %466, %467 : vector<1x16x1xf32>
    %cst_146 = arith.constant 9.99999974E-6 : f32
    %469 = vector.broadcast %cst_146 : f32 to vector<1x16x1xf32>
    %470 = arith.addf %468, %469 : vector<1x16x1xf32>
    %471 = math.rsqrt %470 : vector<1x16x1xf32>
    %472 = arith.mulf %471, %451 : vector<1x16x1xf32>
    %473 = arith.mulf %464, %472 : vector<1x16x1xf32>
    %474 = arith.subf %452, %473 : vector<1x16x1xf32>
    %475 = vector.broadcast %448 : vector<1x16x1xf32> to vector<2x16x256xf32>
    %476 = arith.mulf %426, %475 : vector<2x16x256xf32>
    %477 = vector.broadcast %472 : vector<1x16x1xf32> to vector<2x16x256xf32>
    %478 = arith.mulf %63, %477 : vector<2x16x256xf32>
    %479 = arith.addf %476, %478 : vector<2x16x256xf32>
    %480 = arith.addf %450, %474 : vector<1x16x1xf32>
    %481 = vector.broadcast %480 : vector<1x16x1xf32> to vector<2x16x256xf32>
    %482 = arith.addf %479, %481 : vector<2x16x256xf32>
    %cst_147 = arith.constant 0.000000e+00 : f32
    %483 = vector.broadcast %cst_147 : f32 to vector<2x16x256xf32>
    %484 = arith.maximumf %482, %483 : vector<2x16x256xf32>
    %c0_148 = arith.constant 0 : index
    %c0_149 = arith.constant 0 : index
    %c0_150 = arith.constant 0 : index
    %485 = vector.load %arg4[%c0_148, %c0_149, %c0_150] : memref<2x16x256xf32, #tpu.memory_space<vmem>>, vector<2x16x256xf32>
    tpu.vector_store %arg4[%c0_148, %c0_149, %c0_150], %484 {strides = array<i32>} : memref<2x16x256xf32, #tpu.memory_space<vmem>>, vector<2x16x256xf32>,
    return
  }
}

</mosaic_0001>

<llo_original>
// kernel: fold_bottleneck_ubn.1
$region0: #{fold_bottleneck_ubn.1}
  #allocation0 [shape = 'u32[]', space=smem, size = 0x4, offset = 0x4, fixed_abs, tag = 'smem constant byte address 0x4 - core index']
  #allocation1 [shape = 'u32[144,128]{1,0:T(1,128)}', space=vmem, size = 0x12000, scoped, tag = 'internal scratch']
  %s0 = inlined_call_operand.vmem [shape: f32[2,4,256], index: 0, kind: input, shape index: {}]
  %s1 = inlined_call_operand.vmem [shape: f32[40,4,256], index: 1, kind: input, shape index: {}]
  %s2 = inlined_call_operand.vmem [shape: f32[8,16,256], index: 2, kind: input, shape index: {}]
  %s3 = inlined_call_operand.vmem [shape: f32[8,16,1], index: 3, kind: input, shape index: {}]
  %s4 = inlined_call_operand.vmem [shape: f32[2,16,256], index: 4, kind: output, shape index: {}]
  %s5 = sld [smem:[#allocation0]]
  $region26: #{fold_bottleneck_ubn.1} parent=0
    _
  %s7 = ssub.s32 1, %s5
  %s8 = scalar_select 0, %s7, %s5
  // Predicated region
  $region2: #{fold_bottleneck_ubn.1} parent=0 // pred_check
    _
  $region3: #{fold_bottleneck_ubn.1} parent=0 // pred_check_branch
    %10 = sbr.rel (0) target = $region5
  $region4: #{fold_bottleneck_ubn.1} parent=0 // pred_region
    _
  $region5: #{fold_bottleneck_ubn.1} parent=0 // pred_fallthru
    _
  // Predicated region
  $region6: #{fold_bottleneck_ubn.1} parent=0 // pred_check
    _
  $region7: #{fold_bottleneck_ubn.1} parent=0 // pred_check_branch
    %12 = sbr.rel (0) target = $region9
  $region8: #{fold_bottleneck_ubn.1} parent=0 // pred_region
    _
  $region9: #{fold_bottleneck_ubn.1} parent=0 // pred_fallthru
    _
  // Predicated region
  $region10: #{fold_bottleneck_ubn.1} parent=0 // pred_check
    _
  $region11: #{fold_bottleneck_ubn.1} parent=0 // pred_check_branch
    %14 = sbr.rel (0) target = $region13
  $region12: #{fold_bottleneck_ubn.1} parent=0 // pred_region
    _
  $region13: #{fold_bottleneck_ubn.1} parent=0 // pred_fallthru
    _
  // Predicated region
  $region14: #{fold_bottleneck_ubn.1} parent=0 // pred_check
    _
  $region15: #{fold_bottleneck_ubn.1} parent=0 // pred_check_branch
    %16 = sbr.rel (0) target = $region17
  $region16: #{fold_bottleneck_ubn.1} parent=0 // pred_region
    _
  $region17: #{fold_bottleneck_ubn.1} parent=0 // pred_fallthru
    _
  %v17 = vld [vmem:[%s0] sm:$0xff]
  %v18 = vld [vmem:[%s0 + $0x8] sm:$0xff]
  %v19 = vld [vmem:[%s3] sm:$0xff]
  %v20 = vld [vmem:[%s3 + $0x10] sm:$0xff]
  %v21 = vld [vmem:[%s3 + $0x20] sm:$0xff]
  %v22 = vld [vmem:[%s3 + $0x30] sm:$0xff]
  %v23 = vld [vmem:[%s3 + $0x40] sm:$0xff]
  %v24 = vld [vmem:[%s3 + $0x48] sm:$0xff]
  %v25 = vld [vmem:[%s3 + $0x50] sm:$0xff]
  %v26 = vld [vmem:[%s3 + $0x58] sm:$0xff]
  %v27 = vld [vmem:[%s3 + $0x60] sm:$0xff]
  %v28 = vld [vmem:[%s3 + $0x68] sm:$0xff]
  %v29 = vld [vmem:[%s3 + $0x70] sm:$0xff]
  %v30 = vld [vmem:[%s3 + $0x78] sm:$0xff]
  %v33 = vlaneseq
  %v34 = vshrl.u32 %v33, 7
  %v35 = vsub.s32 0, %v34
  %v36 = vrot.slane %v17, %v35
  %v37 = vlaneseq
  %v38 = vshrl.u32 %v37, 7
  %v39 = vsub.s32 4, %v38
  %v40 = vrot.slane %v17, %v39
  %v41 = vlaneseq
  %v42 = vshrl.u32 %v41, 7
  %v43 = vsub.s32 0, %v42
  %v44 = vrot.slane %v18, %v43
  %v45 = vlaneseq
  %v46 = vshrl.u32 %v45, 7
  %v47 = vsub.s32 4, %v46
  %v48 = vrot.slane %v18, %v47
  %v53 = vlaneseq
  %v54 = vshrl.u32 %v53, 7
  %v55 = vsub.s32 0, %v54
  %v56 = vrot.slane %v36, %v55
  %v57 = vlaneseq
  %v58 = vshrl.u32 %v57, 7
  %v59 = vsub.s32 0, %v58
  %v60 = vrot.slane %v40, %v59
  %v61 = vlaneseq
  %v62 = vshrl.u32 %v61, 7
  %v63 = vsub.s32 0, %v62
  %v64 = vrot.slane %v44, %v63
  %v65 = vlaneseq
  %v66 = vshrl.u32 %v65, 7
  %v67 = vsub.s32 0, %v66
  %v68 = vrot.slane %v48, %v67
  %v69 = vld [vmem:[%s1] sm:$0xff]
  %v71 = vcombine.high %v69, %v69
  %v73 = vmul.f32 %v56, %v69
  %v74 = vmul.f32 %v60, %v71
  %v75 = vmul.f32 %v64, %v69
  %v76 = vmul.f32 %v68, %v71
  %s77 = scalar_lea.vmem %s2, 128
  %v78 = vld [vmem:[%s77] sm:$0xff]
  %v79 = vld [vmem:[%s77 + $0x8] sm:$0xff]
  %v80 = vld [vmem:[%s77 + $0x10] sm:$0xff]
  %v81 = vld [vmem:[%s77 + $0x18] sm:$0xff]
  %v82 = vmul.f32 %v56, %v78
  %v83 = vmul.f32 %v60, %v79
  %v84 = vmul.f32 %v56, %v80
  %v85 = vmul.f32 %v60, %v81
  %v86 = vmul.f32 %v64, %v78
  %v87 = vmul.f32 %v68, %v79
  %v88 = vmul.f32 %v64, %v80
  %v89 = vmul.f32 %v68, %v81
  %v90 = vlaneseq
  %v91 = vshrl.u32 %v90, 7
  %v92 = vsub.s32 1, %v91
  %v93 = vrot.slane %v17, %v92
  %v94 = vlaneseq
  %v95 = vshrl.u32 %v94, 7
  %v96 = vsub.s32 5, %v95
  %v97 = vrot.slane %v17, %v96
  %v98 = vlaneseq
  %v99 = vshrl.u32 %v98, 7
  %v100 = vsub.s32 1, %v99
  %v101 = vrot.slane %v18, %v100
  %v102 = vlaneseq
  %v103 = vshrl.u32 %v102, 7
  %v104 = vsub.s32 5, %v103
  %v105 = vrot.slane %v18, %v104
  %v110 = vlaneseq
  %v111 = vshrl.u32 %v110, 7
  %v112 = vsub.s32 1, %v111
  %v113 = vrot.slane %v93, %v112
  %v114 = vlaneseq
  %v115 = vshrl.u32 %v114, 7
  %v116 = vsub.s32 1, %v115
  %v117 = vrot.slane %v97, %v116
  %v118 = vlaneseq
  %v119 = vshrl.u32 %v118, 7
  %v120 = vsub.s32 1, %v119
  %v121 = vrot.slane %v101, %v120
  %v122 = vlaneseq
  %v123 = vshrl.u32 %v122, 7
  %v124 = vsub.s32 1, %v123
  %v125 = vrot.slane %v105, %v124
  %s126 = scalar_lea.vmem %s1, 8
  %v127 = vld [vmem:[%s126] sm:$0xff]
  %v129 = vcombine.high %v127, %v127
  %v131 = vmul.f32 %v113, %v127
  %v132 = vmul.f32 %v117, %v129
  %v133 = vmul.f32 %v121, %v127
  %v134 = vmul.f32 %v125, %v129
  %s135 = scalar_lea.vmem %s2, 160
  %v136 = vld [vmem:[%s135] sm:$0xff]
  %v137 = vld [vmem:[%s135 + $0x8] sm:$0xff]
  %v138 = vld [vmem:[%s135 + $0x10] sm:$0xff]
  %v139 = vld [vmem:[%s135 + $0x18] sm:$0xff]
  %v140 = vmul.f32 %v113, %v136
  %v141 = vmul.f32 %v117, %v137
  %v142 = vmul.f32 %v113, %v138
  %v143 = vmul.f32 %v117, %v139
  %v144 = vmul.f32 %v121, %v136
  %v145 = vmul.f32 %v125, %v137
  %v146 = vmul.f32 %v121, %v138
  %v147 = vmul.f32 %v125, %v139
  %v148 = vlaneseq
  %v149 = vshrl.u32 %v148, 7
  %v150 = vsub.s32 2, %v149
  %v151 = vrot.slane %v17, %v150
  %v152 = vlaneseq
  %v153 = vshrl.u32 %v152, 7
  %v154 = vsub.s32 6, %v153
  %v155 = vrot.slane %v17, %v154
  %v156 = vlaneseq
  %v157 = vshrl.u32 %v156, 7
  %v158 = vsub.s32 2, %v157
  %v159 = vrot.slane %v18, %v158
  %v160 = vlaneseq
  %v161 = vshrl.u32 %v160, 7
  %v162 = vsub.s32 6, %v161
  %v163 = vrot.slane %v18, %v162
  %v168 = vlaneseq
  %v169 = vshrl.u32 %v168, 7
  %v170 = vsub.s32 2, %v169
  %v171 = vrot.slane %v151, %v170
  %v172 = vlaneseq
  %v173 = vshrl.u32 %v172, 7
  %v174 = vsub.s32 2, %v173
  %v175 = vrot.slane %v155, %v174
  %v176 = vlaneseq
  %v177 = vshrl.u32 %v176, 7
  %v178 = vsub.s32 2, %v177
  %v179 = vrot.slane %v159, %v178
  %v180 = vlaneseq
  %v181 = vshrl.u32 %v180, 7
  %v182 = vsub.s32 2, %v181
  %v183 = vrot.slane %v163, %v182
  %s184 = scalar_lea.vmem %s1, 16
  %v185 = vld [vmem:[%s184] sm:$0xff]
  %v187 = vcombine.high %v185, %v185
  %v189 = vmul.f32 %v171, %v185
  %v190 = vmul.f32 %v175, %v187
  %v191 = vmul.f32 %v179, %v185
  %v192 = vmul.f32 %v183, %v187
  %s193 = scalar_lea.vmem %s2, 192
  %v194 = vld [vmem:[%s193] sm:$0xff]
  %v195 = vld [vmem:[%s193 + $0x8] sm:$0xff]
  %v196 = vld [vmem:[%s193 + $0x10] sm:$0xff]
  %v197 = vld [vmem:[%s193 + $0x18] sm:$0xff]
  %v198 = vmul.f32 %v171, %v194
  %v199 = vmul.f32 %v175, %v195
  %v200 = vmul.f32 %v171, %v196
  %v201 = vmul.f32 %v175, %v197
  %v202 = vmul.f32 %v179, %v194
  %v203 = vmul.f32 %v183, %v195
  %v204 = vmul.f32 %v179, %v196
  %v205 = vmul.f32 %v183, %v197
  %v206 = vlaneseq
  %v207 = vshrl.u32 %v206, 7
  %v208 = vsub.s32 3, %v207
  %v209 = vrot.slane %v17, %v208
  %v210 = vlaneseq
  %v211 = vshrl.u32 %v210, 7
  %v212 = vsub.s32 7, %v211
  %v213 = vrot.slane %v17, %v212
  %v214 = vlaneseq
  %v215 = vshrl.u32 %v214, 7
  %v216 = vsub.s32 3, %v215
  %v217 = vrot.slane %v18, %v216
  %v218 = vlaneseq
  %v219 = vshrl.u32 %v218, 7
  %v220 = vsub.s32 7, %v219
  %v221 = vrot.slane %v18, %v220
  %v226 = vlaneseq
  %v227 = vshrl.u32 %v226, 7
  %v228 = vsub.s32 3, %v227
  %v229 = vrot.slane %v209, %v228
  %v230 = vlaneseq
  %v231 = vshrl.u32 %v230, 7
  %v232 = vsub.s32 3, %v231
  %v233 = vrot.slane %v213, %v232
  %v234 = vlaneseq
  %v235 = vshrl.u32 %v234, 7
  %v236 = vsub.s32 3, %v235
  %v237 = vrot.slane %v217, %v236
  %v238 = vlaneseq
  %v239 = vshrl.u32 %v238, 7
  %v240 = vsub.s32 3, %v239
  %v241 = vrot.slane %v221, %v240
  %s242 = scalar_lea.vmem %s1, 24
  %v243 = vld [vmem:[%s242] sm:$0xff]
  %v245 = vcombine.high %v243, %v243
  %v247 = vmul.f32 %v229, %v243
  %v248 = vmul.f32 %v233, %v245
  %v249 = vmul.f32 %v237, %v243
  %v250 = vmul.f32 %v241, %v245
  %s251 = scalar_lea.vmem %s2, 224
  %v252 = vld [vmem:[%s251] sm:$0xff]
  %v253 = vld [vmem:[%s251 + $0x8] sm:$0xff]
  %v254 = vld [vmem:[%s251 + $0x10] sm:$0xff]
  %v255 = vld [vmem:[%s251 + $0x18] sm:$0xff]
  %v256 = vmul.f32 %v229, %v252
  %v257 = vmul.f32 %v233, %v253
  %v258 = vmul.f32 %v229, %v254
  %v259 = vmul.f32 %v233, %v255
  %v260 = vmul.f32 %v237, %v252
  %v261 = vmul.f32 %v241, %v253
  %v262 = vmul.f32 %v237, %v254
  %v263 = vmul.f32 %v241, %v255
  %v264 = vadd.f32 %v73, %v131
  %v265 = vadd.f32 %v74, %v132
  %v266 = vadd.f32 %v75, %v133
  %v267 = vadd.f32 %v76, %v134
  %v268 = vadd.f32 %v189, %v247
  %v269 = vadd.f32 %v190, %v248
  %v270 = vadd.f32 %v191, %v249
  %v271 = vadd.f32 %v192, %v250
  %v272 = vadd.f32 %v264, %v268
  %v273 = vadd.f32 %v265, %v269
  %v274 = vadd.f32 %v266, %v270
  %v275 = vadd.f32 %v267, %v271
  %v276 = vadd.f32 %v82, %v140
  %v277 = vadd.f32 %v83, %v141
  %v278 = vadd.f32 %v84, %v142
  %v279 = vadd.f32 %v85, %v143
  %v280 = vadd.f32 %v86, %v144
  %v281 = vadd.f32 %v87, %v145
  %v282 = vadd.f32 %v88, %v146
  %v283 = vadd.f32 %v89, %v147
  %v284 = vadd.f32 %v198, %v256
  %v285 = vadd.f32 %v199, %v257
  %v286 = vadd.f32 %v200, %v258
  %v287 = vadd.f32 %v201, %v259
  %v288 = vadd.f32 %v202, %v260
  %v289 = vadd.f32 %v203, %v261
  %v290 = vadd.f32 %v204, %v262
  %v291 = vadd.f32 %v205, %v263
  %v292 = vadd.f32 %v276, %v284
  %v293 = vadd.f32 %v277, %v285
  %v294 = vadd.f32 %v278, %v286
  %v295 = vadd.f32 %v279, %v287
  %v296 = vadd.f32 %v280, %v288
  %v297 = vadd.f32 %v281, %v289
  %v298 = vadd.f32 %v282, %v290
  %v299 = vadd.f32 %v283, %v291
  %v300 = vmul.f32 %v272, %v272
  %v301 = vmul.f32 %v273, %v273
  %v302 = vmul.f32 %v274, %v274
  %v303 = vmul.f32 %v275, %v275
  %vm304 = vcmask 1043456
  %v305 = vsel %vm304, %v272, 0.0
  %v306 = vsel %vm304, %v273, 0.0
  %v307 = vadd.f32 %v305, %v306
  %308 = vadd.xlane.f32.xlu0 %v307
  %v309 = vpop.xlane.xlu0 %308
  %v310 = vsel %vm304, %v274, 0.0
  %v311 = vsel %vm304, %v275, 0.0
  %v312 = vadd.f32 %v310, %v311
  %313 = vadd.xlane.f32.xlu0 %v312
  %v314 = vpop.xlane.xlu0 %313
  %v315 = vsel %vm304, %v300, 0.0
  %v316 = vsel %vm304, %v301, 0.0
  %v317 = vadd.f32 %v315, %v316
  %318 = vadd.xlane.f32.xlu0 %v317
  %v319 = vpop.xlane.xlu0 %318
  %v320 = vsel %vm304, %v302, 0.0
  %v321 = vsel %vm304, %v303, 0.0
  %v322 = vadd.f32 %v320, %v321
  %323 = vadd.xlane.f32.xlu0 %v322
  %v324 = vpop.xlane.xlu0 %323
  %v325 = vsel %vm304, %v309, 0.0
  %v326 = vsel %vm304, %v314, 0.0
  %v327 = vadd.f32 %v325, %v326
  %v328 = vsel %vm304, %v319, 0.0
  %v329 = vsel %vm304, %v324, 0.0
  %v330 = vadd.f32 %v328, %v329
  %v331 = vmul.f32 %v327, 0.001953125
  %v332 = vmul.f32 %v330, 0.001953125
  %v333 = vmul.f32 %v331, %v331
  %v334 = vsub.f32 %v332, %v333
  %v335 = vadd.f32 %v334, 1e-05
  %v336 = vrsqrt.pop %v335
  %v337 = vmul.f32 %v336, %v19
  %v338 = vmul.f32 %v331, %v337
  %v339 = vsub.f32 %v20, %v338
  %341 = vset.pattern.permute.xlu0 0
  %342 = vperm.xlu0 %341, %v337
  %v343 = vpop.permute.xlu0 %342
  %v345 = vmul.f32 %v272, %v343
  %v346 = vmul.f32 %v273, %v343
  %v347 = vmul.f32 %v274, %v343
  %v348 = vmul.f32 %v275, %v343
  %350 = vset.pattern.permute.xlu0 0
  %351 = vperm.xlu0 %350, %v339
  %v352 = vpop.permute.xlu0 %351
  %v354 = vadd.f32 %v345, %v352
  %v355 = vadd.f32 %v346, %v352
  %v356 = vadd.f32 %v347, %v352
  %v357 = vadd.f32 %v348, %v352
  %v358 = vmax.f32 %v354, 0.0
  %v359 = vmax.f32 %v355, 0.0
  %v360 = vmax.f32 %v356, 0.0
  %v361 = vmax.f32 %v357, 0.0
  %v362 = vlaneseq
  %v363 = vshrl.u32 %v362, 7
  %v364 = vsub.s32 0, %v363
  %v365 = vrot.slane %v358, %v364
  %v366 = vlaneseq
  %v367 = vshrl.u32 %v366, 7
  %v368 = vsub.s32 0, %v367
  %v369 = vrot.slane %v359, %v368
  %v370 = vlaneseq
  %v371 = vshrl.u32 %v370, 7
  %v372 = vsub.s32 0, %v371
  %v373 = vrot.slane %v360, %v372
  %v374 = vlaneseq
  %v375 = vshrl.u32 %v374, 7
  %v376 = vsub.s32 0, %v375
  %v377 = vrot.slane %v361, %v376
  %v378 = vlaneseq
  %v379 = vshrl.u32 %v378, 7
  %v380 = vsub.s32 1, %v379
  %v381 = vrot.slane %v358, %v380
  %v382 = vlaneseq
  %v383 = vshrl.u32 %v382, 7
  %v384 = vsub.s32 1, %v383
  %v385 = vrot.slane %v359, %v384
  %v386 = vlaneseq
  %v387 = vshrl.u32 %v386, 7
  %v388 = vsub.s32 1, %v387
  %v389 = vrot.slane %v360, %v388
  %v390 = vlaneseq
  %v391 = vshrl.u32 %v390, 7
  %v392 = vsub.s32 1, %v391
  %v393 = vrot.slane %v361, %v392
  %v394 = vlaneseq
  %v395 = vshrl.u32 %v394, 7
  %v396 = vsub.s32 2, %v395
  %v397 = vrot.slane %v358, %v396
  %v398 = vlaneseq
  %v399 = vshrl.u32 %v398, 7
  %v400 = vsub.s32 2, %v399
  %v401 = vrot.slane %v359, %v400
  %v402 = vlaneseq
  %v403 = vshrl.u32 %v402, 7
  %v404 = vsub.s32 2, %v403
  %v405 = vrot.slane %v360, %v404
  %v406 = vlaneseq
  %v407 = vshrl.u32 %v406, 7
  %v408 = vsub.s32 2, %v407
  %v409 = vrot.slane %v361, %v408
  %v410 = vlaneseq
  %v411 = vshrl.u32 %v410, 7
  %v412 = vsub.s32 3, %v411
  %v413 = vrot.slane %v358, %v412
  %v414 = vlaneseq
  %v415 = vshrl.u32 %v414, 7
  %v416 = vsub.s32 3, %v415
  %v417 = vrot.slane %v359, %v416
  %v418 = vlaneseq
  %v419 = vshrl.u32 %v418, 7
  %v420 = vsub.s32 3, %v419
  %v421 = vrot.slane %v360, %v420
  %v422 = vlaneseq
  %v423 = vshrl.u32 %v422, 7
  %v424 = vsub.s32 3, %v423
  %v425 = vrot.slane %v361, %v424
  %v426 = vlaneseq
  %v427 = vand.u32 %v426, 127
  %v428 = vadd.s32 %v427, 128
  %v429 = vand.u32 %v427, 15
  %v430 = vand.u32 %v428, 15
  %v431 = vshra.s32 %v427, 4
  %v432 = vshra.s32 %v428, 4
  %vm433 = vcmp.ge.s32.totalorder %v429, 1
  %vm434 = vcmp.ge.s32.totalorder %v430, 1
  %vm435 = vcmp.le.s32.totalorder %v429, 14
  %vm436 = vcmp.le.s32.totalorder %v430, 14
  %vm437 = vcmp.ge.s32.totalorder %v431, 1
  %vm438 = vcmp.ge.s32.totalorder %v432, 1
  %vm439 = vcmp.le.s32.totalorder %v431, 14
  %vm440 = vcmp.le.s32.totalorder %v432, 14
  %s441 = scalar_lea.vmem %s1, 32
  %v442 = vld [vmem:[%s441] sm:$0xff]
  %v444 = vcombine.high %v442, %v442
  %v446 = vmul.f32 %v365, %v442
  %v447 = vmul.f32 %v369, %v444
  %v448 = vmul.f32 %v373, %v442
  %v449 = vmul.f32 %v377, %v444
  %s450 = scalar_lea.vmem %s1, 40
  %v451 = vld [vmem:[%s450] sm:$0xff]
  %v453 = vcombine.high %v451, %v451
  %v455 = vmul.f32 %v381, %v451
  %v456 = vmul.f32 %v385, %v453
  %v457 = vmul.f32 %v389, %v451
  %v458 = vmul.f32 %v393, %v453
  %s459 = scalar_lea.vmem %s1, 48
  %v460 = vld [vmem:[%s459] sm:$0xff]
  %v462 = vcombine.high %v460, %v460
  %v464 = vmul.f32 %v397, %v460
  %v465 = vmul.f32 %v401, %v462
  %v466 = vmul.f32 %v405, %v460
  %v467 = vmul.f32 %v409, %v462
  %s468 = scalar_lea.vmem %s1, 56
  %v469 = vld [vmem:[%s468] sm:$0xff]
  %v471 = vcombine.high %v469, %v469
  %v473 = vmul.f32 %v413, %v469
  %v474 = vmul.f32 %v417, %v471
  %v475 = vmul.f32 %v421, %v469
  %v476 = vmul.f32 %v425, %v471
  %v477 = vadd.f32 %v446, %v455
  %v478 = vadd.f32 %v447, %v456
  %v479 = vadd.f32 %v448, %v457
  %v480 = vadd.f32 %v449, %v458
  %v481 = vadd.f32 %v464, %v473
  %v482 = vadd.f32 %v465, %v474
  %v483 = vadd.f32 %v466, %v475
  %v484 = vadd.f32 %v467, %v476
  %v485 = vadd.f32 %v477, %v481
  %v486 = vadd.f32 %v478, %v482
  %v487 = vadd.f32 %v479, %v483
  %v488 = vadd.f32 %v480, %v484
  %489 = vrot.lane.b32.xlu0 %v485, 17
  %v490 = vpop.permute.xlu0 %489
  %491 = vrot.lane.b32.xlu0 %v487, 17
  %v492 = vpop.permute.xlu0 %491
  %493 = vrot.lane.b32.xlu0 %v486, 17
  %v494 = vpop.permute.xlu0 %493
  %495 = vrot.lane.b32.xlu0 %v488, 17
  %v496 = vpop.permute.xlu0 %495
  %vm497 = vcmp.lt.s32.totalorder %v427, 17
  %v498 = vsel %vm497, %v490, %v494
  %v499 = vsel %vm497, %v492, %v496
  %v500 = vsel %vm497, %v494, %v490
  %v501 = vsel %vm497, %v496, %v492
  %vm502 = vmand %vm433, %vm437
  %vm503 = vmand %vm434, %vm438
  %v504 = vsel %vm502, %v500, 0.0
  %v505 = vsel %vm503, %v498, 0.0
  %v506 = vsel %vm502, %v501, 0.0
  %v507 = vsel %vm503, %v499, 0.0
  %s508 = scalar_lea.vmem %s1, 64
  %v509 = vld [vmem:[%s508] sm:$0xff]
  %v511 = vcombine.high %v509, %v509
  %v513 = vmul.f32 %v365, %v509
  %v514 = vmul.f32 %v369, %v511
  %v515 = vmul.f32 %v373, %v509
  %v516 = vmul.f32 %v377, %v511
  %s517 = scalar_lea.vmem %s1, 72
  %v518 = vld [vmem:[%s517] sm:$0xff]
  %v520 = vcombine.high %v518, %v518
  %v522 = vmul.f32 %v381, %v518
  %v523 = vmul.f32 %v385, %v520
  %v524 = vmul.f32 %v389, %v518
  %v525 = vmul.f32 %v393, %v520
  %s526 = scalar_lea.vmem %s1, 80
  %v527 = vld [vmem:[%s526] sm:$0xff]
  %v529 = vcombine.high %v527, %v527
  %v531 = vmul.f32 %v397, %v527
  %v532 = vmul.f32 %v401, %v529
  %v533 = vmul.f32 %v405, %v527
  %v534 = vmul.f32 %v409, %v529
  %s535 = scalar_lea.vmem %s1, 88
  %v536 = vld [vmem:[%s535] sm:$0xff]
  %v538 = vcombine.high %v536, %v536
  %v540 = vmul.f32 %v413, %v536
  %v541 = vmul.f32 %v417, %v538
  %v542 = vmul.f32 %v421, %v536
  %v543 = vmul.f32 %v425, %v538
  %v544 = vadd.f32 %v513, %v522
  %v545 = vadd.f32 %v514, %v523
  %v546 = vadd.f32 %v515, %v524
  %v547 = vadd.f32 %v516, %v525
  %v548 = vadd.f32 %v531, %v540
  %v549 = vadd.f32 %v532, %v541
  %v550 = vadd.f32 %v533, %v542
  %v551 = vadd.f32 %v534, %v543
  %v552 = vadd.f32 %v544, %v548
  %v553 = vadd.f32 %v545, %v549
  %v554 = vadd.f32 %v546, %v550
  %v555 = vadd.f32 %v547, %v551
  %556 = vrot.lane.b32.xlu0 %v552, 16
  %v557 = vpop.permute.xlu0 %556
  %558 = vrot.lane.b32.xlu0 %v554, 16
  %v559 = vpop.permute.xlu0 %558
  %560 = vrot.lane.b32.xlu0 %v553, 16
  %v561 = vpop.permute.xlu0 %560
  %562 = vrot.lane.b32.xlu0 %v555, 16
  %v563 = vpop.permute.xlu0 %562
  %vm564 = vcmp.lt.s32.totalorder %v427, 16
  %v565 = vsel %vm564, %v557, %v561
  %v566 = vsel %vm564, %v559, %v563
  %v567 = vsel %vm564, %v561, %v557
  %v568 = vsel %vm564, %v563, %v559
  %v569 = vsel %vm437, %v567, 0.0
  %v570 = vsel %vm438, %v565, 0.0
  %v571 = vsel %vm437, %v568, 0.0
  %v572 = vsel %vm438, %v566, 0.0
  %s573 = scalar_lea.vmem %s1, 96
  %v574 = vld [vmem:[%s573] sm:$0xff]
  %v576 = vcombine.high %v574, %v574
  %v578 = vmul.f32 %v365, %v574
  %v579 = vmul.f32 %v369, %v576
  %v580 = vmul.f32 %v373, %v574
  %v581 = vmul.f32 %v377, %v576
  %s582 = scalar_lea.vmem %s1, 104
  %v583 = vld [vmem:[%s582] sm:$0xff]
  %v585 = vcombine.high %v583, %v583
  %v587 = vmul.f32 %v381, %v583
  %v588 = vmul.f32 %v385, %v585
  %v589 = vmul.f32 %v389, %v583
  %v590 = vmul.f32 %v393, %v585
  %s591 = scalar_lea.vmem %s1, 112
  %v592 = vld [vmem:[%s591] sm:$0xff]
  %v594 = vcombine.high %v592, %v592
  %v596 = vmul.f32 %v397, %v592
  %v597 = vmul.f32 %v401, %v594
  %v598 = vmul.f32 %v405, %v592
  %v599 = vmul.f32 %v409, %v594
  %s600 = scalar_lea.vmem %s1, 120
  %v601 = vld [vmem:[%s600] sm:$0xff]
  %v603 = vcombine.high %v601, %v601
  %v605 = vmul.f32 %v413, %v601
  %v606 = vmul.f32 %v417, %v603
  %v607 = vmul.f32 %v421, %v601
  %v608 = vmul.f32 %v425, %v603
  %v609 = vadd.f32 %v578, %v587
  %v610 = vadd.f32 %v579, %v588
  %v611 = vadd.f32 %v580, %v589
  %v612 = vadd.f32 %v581, %v590
  %v613 = vadd.f32 %v596, %v605
  %v614 = vadd.f32 %v597, %v606
  %v615 = vadd.f32 %v598, %v607
  %v616 = vadd.f32 %v599, %v608
  %v617 = vadd.f32 %v609, %v613
  %v618 = vadd.f32 %v610, %v614
  %v619 = vadd.f32 %v611, %v615
  %v620 = vadd.f32 %v612, %v616
  %621 = vrot.lane.b32.xlu0 %v617, 15
  %v622 = vpop.permute.xlu0 %621
  %623 = vrot.lane.b32.xlu0 %v619, 15
  %v624 = vpop.permute.xlu0 %623
  %625 = vrot.lane.b32.xlu0 %v618, 15
  %v626 = vpop.permute.xlu0 %625
  %627 = vrot.lane.b32.xlu0 %v620, 15
  %v628 = vpop.permute.xlu0 %627
  %vm629 = vcmp.lt.s32.totalorder %v427, 15
  %v630 = vsel %vm629, %v622, %v626
  %v631 = vsel %vm629, %v624, %v628
  %v632 = vsel %vm629, %v626, %v622
  %v633 = vsel %vm629, %v628, %v624
  %vm634 = vmand %vm435, %vm437
  %vm635 = vmand %vm436, %vm438
  %v636 = vsel %vm634, %v632, 0.0
  %v637 = vsel %vm635, %v630, 0.0
  %v638 = vsel %vm634, %v633, 0.0
  %v639 = vsel %vm635, %v631, 0.0
  %v640 = vadd.f32 %v504, %v569
  %v641 = vadd.f32 %v505, %v570
  %v642 = vadd.f32 %v506, %v571
  %v643 = vadd.f32 %v507, %v572
  %v644 = vadd.f32 %v640, %v636
  %v645 = vadd.f32 %v641, %v637
  %v646 = vadd.f32 %v642, %v638
  %v647 = vadd.f32 %v643, %v639
  %s648 = scalar_lea.vmem %s1, 128
  %v649 = vld [vmem:[%s648] sm:$0xff]
  %v651 = vcombine.high %v649, %v649
  %v653 = vmul.f32 %v365, %v649
  %v654 = vmul.f32 %v369, %v651
  %v655 = vmul.f32 %v373, %v649
  %v656 = vmul.f32 %v377, %v651
  %s657 = scalar_lea.vmem %s1, 136
  %v658 = vld [vmem:[%s657] sm:$0xff]
  %v660 = vcombine.high %v658, %v658
  %v662 = vmul.f32 %v381, %v658
  %v663 = vmul.f32 %v385, %v660
  %v664 = vmul.f32 %v389, %v658
  %v665 = vmul.f32 %v393, %v660
  %s666 = scalar_lea.vmem %s1, 144
  %v667 = vld [vmem:[%s666] sm:$0xff]
  %v669 = vcombine.high %v667, %v667
  %v671 = vmul.f32 %v397, %v667
  %v672 = vmul.f32 %v401, %v669
  %v673 = vmul.f32 %v405, %v667
  %v674 = vmul.f32 %v409, %v669
  %s675 = scalar_lea.vmem %s1, 152
  %v676 = vld [vmem:[%s675] sm:$0xff]
  %v678 = vcombine.high %v676, %v676
  %v680 = vmul.f32 %v413, %v676
  %v681 = vmul.f32 %v417, %v678
  %v682 = vmul.f32 %v421, %v676
  %v683 = vmul.f32 %v425, %v678
  %v684 = vadd.f32 %v653, %v662
  %v685 = vadd.f32 %v654, %v663
  %v686 = vadd.f32 %v655, %v664
  %v687 = vadd.f32 %v656, %v665
  %v688 = vadd.f32 %v671, %v680
  %v689 = vadd.f32 %v672, %v681
  %v690 = vadd.f32 %v673, %v682
  %v691 = vadd.f32 %v674, %v683
  %v692 = vadd.f32 %v684, %v688
  %v693 = vadd.f32 %v685, %v689
  %v694 = vadd.f32 %v686, %v690
  %v695 = vadd.f32 %v687, %v691
  %696 = vrot.lane.b32.xlu0 %v692, 1
  %v697 = vpop.permute.xlu0 %696
  %698 = vrot.lane.b32.xlu0 %v694, 1
  %v699 = vpop.permute.xlu0 %698
  %700 = vrot.lane.b32.xlu0 %v693, 1
  %v701 = vpop.permute.xlu0 %700
  %702 = vrot.lane.b32.xlu0 %v695, 1
  %v703 = vpop.permute.xlu0 %702
  %vm704 = vcmp.lt.s32.totalorder %v427, 1
  %v705 = vsel %vm704, %v697, %v701
  %v706 = vsel %vm704, %v699, %v703
  %v707 = vsel %vm704, %v701, %v697
  %v708 = vsel %vm704, %v703, %v699
  %v709 = vsel %vm433, %v707, 0.0
  %v710 = vsel %vm434, %v705, 0.0
  %v711 = vsel %vm433, %v708, 0.0
  %v712 = vsel %vm434, %v706, 0.0
  %s713 = scalar_lea.vmem %s1, 160
  %v714 = vld [vmem:[%s713] sm:$0xff]
  %v716 = vcombine.high %v714, %v714
  %v718 = vmul.f32 %v365, %v714
  %v719 = vmul.f32 %v369, %v716
  %v720 = vmul.f32 %v373, %v714
  %v721 = vmul.f32 %v377, %v716
  %s722 = scalar_lea.vmem %s1, 168
  %v723 = vld [vmem:[%s722] sm:$0xff]
  %v725 = vcombine.high %v723, %v723
  %v727 = vmul.f32 %v381, %v723
  %v728 = vmul.f32 %v385, %v725
  %v729 = vmul.f32 %v389, %v723
  %v730 = vmul.f32 %v393, %v725
  %s731 = scalar_lea.vmem %s1, 176
  %v732 = vld [vmem:[%s731] sm:$0xff]
  %v734 = vcombine.high %v732, %v732
  %v736 = vmul.f32 %v397, %v732
  %v737 = vmul.f32 %v401, %v734
  %v738 = vmul.f32 %v405, %v732
  %v739 = vmul.f32 %v409, %v734
  %s740 = scalar_lea.vmem %s1, 184
  %v741 = vld [vmem:[%s740] sm:$0xff]
  %v743 = vcombine.high %v741, %v741
  %v745 = vmul.f32 %v413, %v741
  %v746 = vmul.f32 %v417, %v743
  %v747 = vmul.f32 %v421, %v741
  %v748 = vmul.f32 %v425, %v743
  %v749 = vadd.f32 %v718, %v727
  %v750 = vadd.f32 %v719, %v728
  %v751 = vadd.f32 %v720, %v729
  %v752 = vadd.f32 %v721, %v730
  %v753 = vadd.f32 %v736, %v745
  %v754 = vadd.f32 %v737, %v746
  %v755 = vadd.f32 %v738, %v747
  %v756 = vadd.f32 %v739, %v748
  %v757 = vadd.f32 %v749, %v753
  %v758 = vadd.f32 %v750, %v754
  %v759 = vadd.f32 %v751, %v755
  %v760 = vadd.f32 %v752, %v756
  %s761 = scalar_lea.vmem %s1, 192
  %v762 = vld [vmem:[%s761] sm:$0xff]
  %v764 = vcombine.high %v762, %v762
  %v766 = vmul.f32 %v365, %v762
  %v767 = vmul.f32 %v369, %v764
  %v768 = vmul.f32 %v373, %v762
  %v769 = vmul.f32 %v377, %v764
  %s770 = scalar_lea.vmem %s1, 200
  %v771 = vld [vmem:[%s770] sm:$0xff]
  %v773 = vcombine.high %v771, %v771
  %v775 = vmul.f32 %v381, %v771
  %v776 = vmul.f32 %v385, %v773
  %v777 = vmul.f32 %v389, %v771
  %v778 = vmul.f32 %v393, %v773
  %s779 = scalar_lea.vmem %s1, 208
  %v780 = vld [vmem:[%s779] sm:$0xff]
  %v782 = vcombine.high %v780, %v780
  %v784 = vmul.f32 %v397, %v780
  %v785 = vmul.f32 %v401, %v782
  %v786 = vmul.f32 %v405, %v780
  %v787 = vmul.f32 %v409, %v782
  %s788 = scalar_lea.vmem %s1, 216
  %v789 = vld [vmem:[%s788] sm:$0xff]
  %v791 = vcombine.high %v789, %v789
  %v793 = vmul.f32 %v413, %v789
  %v794 = vmul.f32 %v417, %v791
  %v795 = vmul.f32 %v421, %v789
  %v796 = vmul.f32 %v425, %v791
  %v797 = vadd.f32 %v766, %v775
  %v798 = vadd.f32 %v767, %v776
  %v799 = vadd.f32 %v768, %v777
  %v800 = vadd.f32 %v769, %v778
  %v801 = vadd.f32 %v784, %v793
  %v802 = vadd.f32 %v785, %v794
  %v803 = vadd.f32 %v786, %v795
  %v804 = vadd.f32 %v787, %v796
  %v805 = vadd.f32 %v797, %v801
  %v806 = vadd.f32 %v798, %v802
  %v807 = vadd.f32 %v799, %v803
  %v808 = vadd.f32 %v800, %v804
  %809 = vrot.lane.b32.xlu0 %v805, 127
  %v810 = vpop.permute.xlu0 %809
  %811 = vrot.lane.b32.xlu0 %v807, 127
  %v812 = vpop.permute.xlu0 %811
  %813 = vrot.lane.b32.xlu0 %v806, 127
  %v814 = vpop.permute.xlu0 %813
  %815 = vrot.lane.b32.xlu0 %v808, 127
  %v816 = vpop.permute.xlu0 %815
  %vm817 = vcmp.lt.s32.totalorder %v427, 127
  %v818 = vsel %vm817, %v810, %v814
  %v819 = vsel %vm817, %v812, %v816
  %v820 = vsel %vm817, %v814, %v810
  %v821 = vsel %vm817, %v816, %v812
  %v822 = vsel %vm435, %v818, 0.0
  %v823 = vsel %vm436, %v820, 0.0
  %v824 = vsel %vm435, %v819, 0.0
  %v825 = vsel %vm436, %v821, 0.0
  %v826 = vadd.f32 %v709, %v757
  %v827 = vadd.f32 %v710, %v758
  %v828 = vadd.f32 %v711, %v759
  %v829 = vadd.f32 %v712, %v760
  %v830 = vadd.f32 %v826, %v822
  %v831 = vadd.f32 %v827, %v823
  %v832 = vadd.f32 %v828, %v824
  %v833 = vadd.f32 %v829, %v825
  %s834 = scalar_lea.vmem %s1, 224
  %v835 = vld [vmem:[%s834] sm:$0xff]
  %v837 = vcombine.high %v835, %v835
  %v839 = vmul.f32 %v365, %v835
  %v840 = vmul.f32 %v369, %v837
  %v841 = vmul.f32 %v373, %v835
  %v842 = vmul.f32 %v377, %v837
  %s843 = scalar_lea.vmem %s1, 232
  %v844 = vld [vmem:[%s843] sm:$0xff]
  %v846 = vcombine.high %v844, %v844
  %v848 = vmul.f32 %v381, %v844
  %v849 = vmul.f32 %v385, %v846
  %v850 = vmul.f32 %v389, %v844
  %v851 = vmul.f32 %v393, %v846
  %s852 = scalar_lea.vmem %s1, 240
  %v853 = vld [vmem:[%s852] sm:$0xff]
  %v855 = vcombine.high %v853, %v853
  %v857 = vmul.f32 %v397, %v853
  %v858 = vmul.f32 %v401, %v855
  %v859 = vmul.f32 %v405, %v853
  %v860 = vmul.f32 %v409, %v855
  %s861 = scalar_lea.vmem %s1, 248
  %v862 = vld [vmem:[%s861] sm:$0xff]
  %v864 = vcombine.high %v862, %v862
  %v866 = vmul.f32 %v413, %v862
  %v867 = vmul.f32 %v417, %v864
  %v868 = vmul.f32 %v421, %v862
  %v869 = vmul.f32 %v425, %v864
  %v870 = vadd.f32 %v839, %v848
  %v871 = vadd.f32 %v840, %v849
  %v872 = vadd.f32 %v841, %v850
  %v873 = vadd.f32 %v842, %v851
  %v874 = vadd.f32 %v857, %v866
  %v875 = vadd.f32 %v858, %v867
  %v876 = vadd.f32 %v859, %v868
  %v877 = vadd.f32 %v860, %v869
  %v878 = vadd.f32 %v870, %v874
  %v879 = vadd.f32 %v871, %v875
  %v880 = vadd.f32 %v872, %v876
  %v881 = vadd.f32 %v873, %v877
  %882 = vrot.lane.b32.xlu0 %v878, 113
  %v883 = vpop.permute.xlu0 %882
  %884 = vrot.lane.b32.xlu0 %v880, 113
  %v885 = vpop.permute.xlu0 %884
  %886 = vrot.lane.b32.xlu0 %v879, 113
  %v887 = vpop.permute.xlu0 %886
  %888 = vrot.lane.b32.xlu0 %v881, 113
  %v889 = vpop.permute.xlu0 %888
  %vm890 = vcmp.lt.s32.totalorder %v427, 113
  %v891 = vsel %vm890, %v883, %v887
  %v892 = vsel %vm890, %v885, %v889
  %v893 = vsel %vm890, %v887, %v883
  %v894 = vsel %vm890, %v889, %v885
  %vm895 = vmand %vm433, %vm439
  %vm896 = vmand %vm434, %vm440
  %v897 = vsel %vm895, %v891, 0.0
  %v898 = vsel %vm896, %v893, 0.0
  %v899 = vsel %vm895, %v892, 0.0
  %v900 = vsel %vm896, %v894, 0.0
  %s901 = scalar_lea.vmem %s1, 256
  %v902 = vld [vmem:[%s901] sm:$0xff]
  %v904 = vcombine.high %v902, %v902
  %v906 = vmul.f32 %v365, %v902
  %v907 = vmul.f32 %v369, %v904
  %v908 = vmul.f32 %v373, %v902
  %v909 = vmul.f32 %v377, %v904
  %s910 = scalar_lea.vmem %s1, 264
  %v911 = vld [vmem:[%s910] sm:$0xff]
  %v913 = vcombine.high %v911, %v911
  %v915 = vmul.f32 %v381, %v911
  %v916 = vmul.f32 %v385, %v913
  %v917 = vmul.f32 %v389, %v911
  %v918 = vmul.f32 %v393, %v913
  %s919 = scalar_lea.vmem %s1, 272
  %v920 = vld [vmem:[%s919] sm:$0xff]
  %v922 = vcombine.high %v920, %v920
  %v924 = vmul.f32 %v397, %v920
  %v925 = vmul.f32 %v401, %v922
  %v926 = vmul.f32 %v405, %v920
  %v927 = vmul.f32 %v409, %v922
  %s928 = scalar_lea.vmem %s1, 280
  %v929 = vld [vmem:[%s928] sm:$0xff]
  %v931 = vcombine.high %v929, %v929
  %v933 = vmul.f32 %v413, %v929
  %v934 = vmul.f32 %v417, %v931
  %v935 = vmul.f32 %v421, %v929
  %v936 = vmul.f32 %v425, %v931
  %v937 = vadd.f32 %v906, %v915
  %v938 = vadd.f32 %v907, %v916
  %v939 = vadd.f32 %v908, %v917
  %v940 = vadd.f32 %v909, %v918
  %v941 = vadd.f32 %v924, %v933
  %v942 = vadd.f32 %v925, %v934
  %v943 = vadd.f32 %v926, %v935
  %v944 = vadd.f32 %v927, %v936
  %v945 = vadd.f32 %v937, %v941
  %v946 = vadd.f32 %v938, %v942
  %v947 = vadd.f32 %v939, %v943
  %v948 = vadd.f32 %v940, %v944
  %949 = vrot.lane.b32.xlu0 %v945, 112
  %v950 = vpop.permute.xlu0 %949
  %951 = vrot.lane.b32.xlu0 %v947, 112
  %v952 = vpop.permute.xlu0 %951
  %953 = vrot.lane.b32.xlu0 %v946, 112
  %v954 = vpop.permute.xlu0 %953
  %955 = vrot.lane.b32.xlu0 %v948, 112
  %v956 = vpop.permute.xlu0 %955
  %vm957 = vcmp.lt.s32.totalorder %v427, 112
  %v958 = vsel %vm957, %v950, %v954
  %v959 = vsel %vm957, %v952, %v956
  %v960 = vsel %vm957, %v954, %v950
  %v961 = vsel %vm957, %v956, %v952
  %v962 = vsel %vm439, %v958, 0.0
  %v963 = vsel %vm440, %v960, 0.0
  %v964 = vsel %vm439, %v959, 0.0
  %v965 = vsel %vm440, %v961, 0.0
  %s966 = scalar_lea.vmem %s1, 288
  %v967 = vld [vmem:[%s966] sm:$0xff]
  %v969 = vcombine.high %v967, %v967
  %v971 = vmul.f32 %v365, %v967
  %v972 = vmul.f32 %v369, %v969
  %v973 = vmul.f32 %v373, %v967
  %v974 = vmul.f32 %v377, %v969
  %s975 = scalar_lea.vmem %s1, 296
  %v976 = vld [vmem:[%s975] sm:$0xff]
  %v978 = vcombine.high %v976, %v976
  %v980 = vmul.f32 %v381, %v976
  %v981 = vmul.f32 %v385, %v978
  %v982 = vmul.f32 %v389, %v976
  %v983 = vmul.f32 %v393, %v978
  %s984 = scalar_lea.vmem %s1, 304
  %v985 = vld [vmem:[%s984] sm:$0xff]
  %v987 = vcombine.high %v985, %v985
  %v989 = vmul.f32 %v397, %v985
  %v990 = vmul.f32 %v401, %v987
  %v991 = vmul.f32 %v405, %v985
  %v992 = vmul.f32 %v409, %v987
  %s993 = scalar_lea.vmem %s1, 312
  %v994 = vld [vmem:[%s993] sm:$0xff]
  %v996 = vcombine.high %v994, %v994
  %v998 = vmul.f32 %v413, %v994
  %v999 = vmul.f32 %v417, %v996
  %v1000 = vmul.f32 %v421, %v994
  %v1001 = vmul.f32 %v425, %v996
  %v1002 = vadd.f32 %v971, %v980
  %v1003 = vadd.f32 %v972, %v981
  %v1004 = vadd.f32 %v973, %v982
  %v1005 = vadd.f32 %v974, %v983
  %v1006 = vadd.f32 %v989, %v998
  %v1007 = vadd.f32 %v990, %v999
  %v1008 = vadd.f32 %v991, %v1000
  %v1009 = vadd.f32 %v992, %v1001
  %v1010 = vadd.f32 %v1002, %v1006
  %v1011 = vadd.f32 %v1003, %v1007
  %v1012 = vadd.f32 %v1004, %v1008
  %v1013 = vadd.f32 %v1005, %v1009
  %1014 = vrot.lane.b32.xlu0 %v1010, 111
  %v1015 = vpop.permute.xlu0 %1014
  %1016 = vrot.lane.b32.xlu0 %v1012, 111
  %v1017 = vpop.permute.xlu0 %1016
  %1018 = vrot.lane.b32.xlu0 %v1011, 111
  %v1019 = vpop.permute.xlu0 %1018
  %1020 = vrot.lane.b32.xlu0 %v1013, 111
  %v1021 = vpop.permute.xlu0 %1020
  %vm1022 = vcmp.lt.s32.totalorder %v427, 111
  %v1023 = vsel %vm1022, %v1015, %v1019
  %v1024 = vsel %vm1022, %v1017, %v1021
  %v1025 = vsel %vm1022, %v1019, %v1015
  %v1026 = vsel %vm1022, %v1021, %v1017
  %vm1027 = vmand %vm435, %vm439
  %vm1028 = vmand %vm436, %vm440
  %v1029 = vsel %vm1027, %v1023, 0.0
  %v1030 = vsel %vm1028, %v1025, 0.0
  %v1031 = vsel %vm1027, %v1024, 0.0
  %v1032 = vsel %vm1028, %v1026, 0.0
  %v1033 = vadd.f32 %v897, %v962
  %v1034 = vadd.f32 %v898, %v963
  %v1035 = vadd.f32 %v899, %v964
  %v1036 = vadd.f32 %v900, %v965
  %v1037 = vadd.f32 %v1033, %v1029
  %v1038 = vadd.f32 %v1034, %v1030
  %v1039 = vadd.f32 %v1035, %v1031
  %v1040 = vadd.f32 %v1036, %v1032
  %v1041 = vadd.f32 %v644, %v830
  %v1042 = vadd.f32 %v645, %v831
  %v1043 = vadd.f32 %v646, %v832
  %v1044 = vadd.f32 %v647, %v833
  %v1045 = vadd.f32 %v1041, %v1037
  %v1046 = vadd.f32 %v1042, %v1038
  %v1047 = vadd.f32 %v1043, %v1039
  %v1048 = vadd.f32 %v1044, %v1040
  %v1049 = vmul.f32 %v1045, %v1045
  %v1050 = vmul.f32 %v1046, %v1046
  %v1051 = vmul.f32 %v1047, %v1047
  %v1052 = vmul.f32 %v1048, %v1048
  %v1053 = vsel %vm304, %v1045, 0.0
  %v1054 = vsel %vm304, %v1046, 0.0
  %v1055 = vadd.f32 %v1053, %v1054
  %1056 = vadd.xlane.f32.xlu0 %v1055
  %v1057 = vpop.xlane.xlu0 %1056
  %v1058 = vsel %vm304, %v1047, 0.0
  %v1059 = vsel %vm304, %v1048, 0.0
  %v1060 = vadd.f32 %v1058, %v1059
  %1061 = vadd.xlane.f32.xlu0 %v1060
  %v1062 = vpop.xlane.xlu0 %1061
  %v1063 = vsel %vm304, %v1049, 0.0
  %v1064 = vsel %vm304, %v1050, 0.0
  %v1065 = vadd.f32 %v1063, %v1064
  %1066 = vadd.xlane.f32.xlu0 %v1065
  %v1067 = vpop.xlane.xlu0 %1066
  %v1068 = vsel %vm304, %v1051, 0.0
  %v1069 = vsel %vm304, %v1052, 0.0
  %v1070 = vadd.f32 %v1068, %v1069
  %1071 = vadd.xlane.f32.xlu0 %v1070
  %v1072 = vpop.xlane.xlu0 %1071
  %v1073 = vsel %vm304, %v1057, 0.0
  %v1074 = vsel %vm304, %v1062, 0.0
  %v1075 = vadd.f32 %v1073, %v1074
  %v1076 = vsel %vm304, %v1067, 0.0
  %v1077 = vsel %vm304, %v1072, 0.0
  %v1078 = vadd.f32 %v1076, %v1077
  %v1079 = vmul.f32 %v1075, 0.001953125
  %v1080 = vmul.f32 %v1078, 0.001953125
  %v1081 = vmul.f32 %v1079, %v1079
  %v1082 = vsub.f32 %v1080, %v1081
  %v1083 = vadd.f32 %v1082, 1e-05
  %v1084 = vrsqrt.pop %v1083
  %v1085 = vmul.f32 %v1084, %v21
  %v1086 = vmul.f32 %v1079, %v1085
  %v1087 = vsub.f32 %v22, %v1086
  %1089 = vset.pattern.permute.xlu0 0
  %1090 = vperm.xlu0 %1089, %v1085
  %v1091 = vpop.permute.xlu0 %1090
  %v1093 = vmul.f32 %v1045, %v1091
  %v1094 = vmul.f32 %v1046, %v1091
  %v1095 = vmul.f32 %v1047, %v1091
  %v1096 = vmul.f32 %v1048, %v1091
  %1098 = vset.pattern.permute.xlu0 0
  %1099 = vperm.xlu0 %1098, %v1087
  %v1100 = vpop.permute.xlu0 %1099
  %v1102 = vadd.f32 %v1093, %v1100
  %v1103 = vadd.f32 %v1094, %v1100
  %v1104 = vadd.f32 %v1095, %v1100
  %v1105 = vadd.f32 %v1096, %v1100
  %v1106 = vmax.f32 %v1102, 0.0
  %v1107 = vmax.f32 %v1103, 0.0
  %v1108 = vmax.f32 %v1104, 0.0
  %v1109 = vmax.f32 %v1105, 0.0
  %v1110 = vlaneseq
  %v1111 = vshrl.u32 %v1110, 7
  %v1112 = vsub.s32 0, %v1111
  %v1113 = vrot.slane %v1106, %v1112
  %v1114 = vlaneseq
  %v1115 = vshrl.u32 %v1114, 7
  %v1116 = vsub.s32 0, %v1115
  %v1117 = vrot.slane %v1107, %v1116
  %v1118 = vlaneseq
  %v1119 = vshrl.u32 %v1118, 7
  %v1120 = vsub.s32 0, %v1119
  %v1121 = vrot.slane %v1108, %v1120
  %v1122 = vlaneseq
  %v1123 = vshrl.u32 %v1122, 7
  %v1124 = vsub.s32 0, %v1123
  %v1125 = vrot.slane %v1109, %v1124
  %v1126 = vlaneseq
  %v1127 = vshrl.u32 %v1126, 7
  %v1128 = vsub.s32 1, %v1127
  %v1129 = vrot.slane %v1106, %v1128
  %v1130 = vlaneseq
  %v1131 = vshrl.u32 %v1130, 7
  %v1132 = vsub.s32 1, %v1131
  %v1133 = vrot.slane %v1107, %v1132
  %v1134 = vlaneseq
  %v1135 = vshrl.u32 %v1134, 7
  %v1136 = vsub.s32 1, %v1135
  %v1137 = vrot.slane %v1108, %v1136
  %v1138 = vlaneseq
  %v1139 = vshrl.u32 %v1138, 7
  %v1140 = vsub.s32 1, %v1139
  %v1141 = vrot.slane %v1109, %v1140
  %v1142 = vlaneseq
  %v1143 = vshrl.u32 %v1142, 7
  %v1144 = vsub.s32 2, %v1143
  %v1145 = vrot.slane %v1106, %v1144
  %v1146 = vlaneseq
  %v1147 = vshrl.u32 %v1146, 7
  %v1148 = vsub.s32 2, %v1147
  %v1149 = vrot.slane %v1107, %v1148
  %v1150 = vlaneseq
  %v1151 = vshrl.u32 %v1150, 7
  %v1152 = vsub.s32 2, %v1151
  %v1153 = vrot.slane %v1108, %v1152
  %v1154 = vlaneseq
  %v1155 = vshrl.u32 %v1154, 7
  %v1156 = vsub.s32 2, %v1155
  %v1157 = vrot.slane %v1109, %v1156
  %v1158 = vlaneseq
  %v1159 = vshrl.u32 %v1158, 7
  %v1160 = vsub.s32 3, %v1159
  %v1161 = vrot.slane %v1106, %v1160
  %v1162 = vlaneseq
  %v1163 = vshrl.u32 %v1162, 7
  %v1164 = vsub.s32 3, %v1163
  %v1165 = vrot.slane %v1107, %v1164
  %v1166 = vlaneseq
  %v1167 = vshrl.u32 %v1166, 7
  %v1168 = vsub.s32 3, %v1167
  %v1169 = vrot.slane %v1108, %v1168
  %v1170 = vlaneseq
  %v1171 = vshrl.u32 %v1170, 7
  %v1172 = vsub.s32 3, %v1171
  %v1173 = vrot.slane %v1109, %v1172
  %v1174 = vld [vmem:[%s2] sm:$0xff]
  %v1175 = vld [vmem:[%s2 + $0x8] sm:$0xff]
  %v1176 = vld [vmem:[%s2 + $0x10] sm:$0xff]
  %v1177 = vld [vmem:[%s2 + $0x18] sm:$0xff]
  %v1178 = vmul.f32 %v1113, %v1174
  %v1179 = vmul.f32 %v1117, %v1175
  %v1180 = vmul.f32 %v1113, %v1176
  %v1181 = vmul.f32 %v1117, %v1177
  %v1182 = vmul.f32 %v1121, %v1174
  %v1183 = vmul.f32 %v1125, %v1175
  %v1184 = vmul.f32 %v1121, %v1176
  %v1185 = vmul.f32 %v1125, %v1177
  %s1186 = scalar_lea.vmem %s2, 32
  %v1187 = vld [vmem:[%s1186] sm:$0xff]
  %v1188 = vld [vmem:[%s1186 + $0x8] sm:$0xff]
  %v1189 = vld [vmem:[%s1186 + $0x10] sm:$0xff]
  %v1190 = vld [vmem:[%s1186 + $0x18] sm:$0xff]
  %v1191 = vmul.f32 %v1129, %v1187
  %v1192 = vmul.f32 %v1133, %v1188
  %v1193 = vmul.f32 %v1129, %v1189
  %v1194 = vmul.f32 %v1133, %v1190
  %v1195 = vmul.f32 %v1137, %v1187
  %v1196 = vmul.f32 %v1141, %v1188
  %v1197 = vmul.f32 %v1137, %v1189
  %v1198 = vmul.f32 %v1141, %v1190
  %s1199 = scalar_lea.vmem %s2, 64
  %v1200 = vld [vmem:[%s1199] sm:$0xff]
  %v1201 = vld [vmem:[%s1199 + $0x8] sm:$0xff]
  %v1202 = vld [vmem:[%s1199 + $0x10] sm:$0xff]
  %v1203 = vld [vmem:[%s1199 + $0x18] sm:$0xff]
  %v1204 = vmul.f32 %v1145, %v1200
  %v1205 = vmul.f32 %v1149, %v1201
  %v1206 = vmul.f32 %v1145, %v1202
  %v1207 = vmul.f32 %v1149, %v1203
  %v1208 = vmul.f32 %v1153, %v1200
  %v1209 = vmul.f32 %v1157, %v1201
  %v1210 = vmul.f32 %v1153, %v1202
  %v1211 = vmul.f32 %v1157, %v1203
  %s1212 = scalar_lea.vmem %s2, 96
  %v1213 = vld [vmem:[%s1212] sm:$0xff]
  %v1214 = vld [vmem:[%s1212 + $0x8] sm:$0xff]
  %v1215 = vld [vmem:[%s1212 + $0x10] sm:$0xff]
  %v1216 = vld [vmem:[%s1212 + $0x18] sm:$0xff]
  %v1217 = vmul.f32 %v1161, %v1213
  %v1218 = vmul.f32 %v1165, %v1214
  %v1219 = vmul.f32 %v1161, %v1215
  %v1220 = vmul.f32 %v1165, %v1216
  %v1221 = vmul.f32 %v1169, %v1213
  %v1222 = vmul.f32 %v1173, %v1214
  %v1223 = vmul.f32 %v1169, %v1215
  %v1224 = vmul.f32 %v1173, %v1216
  %v1225 = vadd.f32 %v1178, %v1191
  %v1226 = vadd.f32 %v1179, %v1192
  %v1227 = vadd.f32 %v1180, %v1193
  %v1228 = vadd.f32 %v1181, %v1194
  %v1229 = vadd.f32 %v1182, %v1195
  %v1230 = vadd.f32 %v1183, %v1196
  %v1231 = vadd.f32 %v1184, %v1197
  %v1232 = vadd.f32 %v1185, %v1198
  %v1233 = vadd.f32 %v1204, %v1217
  %v1234 = vadd.f32 %v1205, %v1218
  %v1235 = vadd.f32 %v1206, %v1219
  %v1236 = vadd.f32 %v1207, %v1220
  %v1237 = vadd.f32 %v1208, %v1221
  %v1238 = vadd.f32 %v1209, %v1222
  %v1239 = vadd.f32 %v1210, %v1223
  %v1240 = vadd.f32 %v1211, %v1224
  %v1241 = vadd.f32 %v1225, %v1233
  %v1242 = vadd.f32 %v1226, %v1234
  %v1243 = vadd.f32 %v1227, %v1235
  %v1244 = vadd.f32 %v1228, %v1236
  %v1245 = vadd.f32 %v1229, %v1237
  %v1246 = vadd.f32 %v1230, %v1238
  %v1247 = vadd.f32 %v1231, %v1239
  %v1248 = vadd.f32 %v1232, %v1240
  %v1249 = vmul.f32 %v1241, %v1241
  %v1250 = vmul.f32 %v1242, %v1242
  %v1251 = vmul.f32 %v1243, %v1243
  %v1252 = vmul.f32 %v1244, %v1244
  %v1253 = vmul.f32 %v1245, %v1245
  %v1254 = vmul.f32 %v1246, %v1246
  %v1255 = vmul.f32 %v1247, %v1247
  %v1256 = vmul.f32 %v1248, %v1248
  %v1257 = vadd.f32 %v1241, %v1242
  %1258 = vadd.xlane.f32.xlu0 %v1257
  %v1259 = vpop.xlane.xlu0 %1258
  %v1260 = vadd.f32 %v1243, %v1244
  %1261 = vadd.xlane.f32.xlu0 %v1260
  %v1262 = vpop.xlane.xlu0 %1261
  %v1263 = vadd.f32 %v1245, %v1246
  %1264 = vadd.xlane.f32.xlu0 %v1263
  %v1265 = vpop.xlane.xlu0 %1264
  %v1266 = vadd.f32 %v1247, %v1248
  %1267 = vadd.xlane.f32.xlu0 %v1266
  %v1268 = vpop.xlane.xlu0 %1267
  %v1269 = vadd.f32 %v1249, %v1250
  %1270 = vadd.xlane.f32.xlu0 %v1269
  %v1271 = vpop.xlane.xlu0 %1270
  %v1272 = vadd.f32 %v1251, %v1252
  %1273 = vadd.xlane.f32.xlu0 %v1272
  %v1274 = vpop.xlane.xlu0 %1273
  %v1275 = vadd.f32 %v1253, %v1254
  %1276 = vadd.xlane.f32.xlu0 %v1275
  %v1277 = vpop.xlane.xlu0 %1276
  %v1278 = vadd.f32 %v1255, %v1256
  %1279 = vadd.xlane.f32.xlu0 %v1278
  %v1280 = vpop.xlane.xlu0 %1279
  %v1281 = vadd.f32 %v1259, %v1265
  %v1282 = vadd.f32 %v1262, %v1268
  %v1283 = vadd.f32 %v1271, %v1277
  %v1284 = vadd.f32 %v1274, %v1280
  %v1285 = vmul.f32 %v1281, 0.001953125
  %v1286 = vmul.f32 %v1282, 0.001953125
  %v1287 = vmul.f32 %v1283, 0.001953125
  %v1288 = vmul.f32 %v1284, 0.001953125
  %v1289 = vmul.f32 %v1285, %v1285
  %v1290 = vmul.f32 %v1286, %v1286
  %v1291 = vsub.f32 %v1287, %v1289
  %v1292 = vsub.f32 %v1288, %v1290
  %v1293 = vadd.f32 %v1291, 1e-05
  %v1294 = vadd.f32 %v1292, 1e-05
  %v1295 = vrsqrt.pop %v1293
  %v1296 = vrsqrt.pop %v1294
  %v1297 = vmul.f32 %v1295, %v23
  %v1298 = vmul.f32 %v1296, %v24
  %v1299 = vmul.f32 %v1285, %v1297
  %v1300 = vmul.f32 %v1286, %v1298
  %v1301 = vsub.f32 %v25, %v1299
  %v1302 = vsub.f32 %v26, %v1300
  %v1303 = vmul.f32 %v292, %v292
  %v1304 = vmul.f32 %v293, %v293
  %v1305 = vmul.f32 %v294, %v294
  %v1306 = vmul.f32 %v295, %v295
  %v1307 = vmul.f32 %v296, %v296
  %v1308 = vmul.f32 %v297, %v297
  %v1309 = vmul.f32 %v298, %v298
  %v1310 = vmul.f32 %v299, %v299
  %v1311 = vadd.f32 %v292, %v293
  %1312 = vadd.xlane.f32.xlu0 %v1311
  %v1313 = vpop.xlane.xlu0 %1312
  %v1314 = vadd.f32 %v294, %v295
  %1315 = vadd.xlane.f32.xlu0 %v1314
  %v1316 = vpop.xlane.xlu0 %1315
  %v1317 = vadd.f32 %v296, %v297
  %1318 = vadd.xlane.f32.xlu0 %v1317
  %v1319 = vpop.xlane.xlu0 %1318
  %v1320 = vadd.f32 %v298, %v299
  %1321 = vadd.xlane.f32.xlu0 %v1320
  %v1322 = vpop.xlane.xlu0 %1321
  %v1323 = vadd.f32 %v1303, %v1304
  %1324 = vadd.xlane.f32.xlu0 %v1323
  %v1325 = vpop.xlane.xlu0 %1324
  %v1326 = vadd.f32 %v1305, %v1306
  %1327 = vadd.xlane.f32.xlu0 %v1326
  %v1328 = vpop.xlane.xlu0 %1327
  %v1329 = vadd.f32 %v1307, %v1308
  %1330 = vadd.xlane.f32.xlu0 %v1329
  %v1331 = vpop.xlane.xlu0 %1330
  %v1332 = vadd.f32 %v1309, %v1310
  %1333 = vadd.xlane.f32.xlu0 %v1332
  %v1334 = vpop.xlane.xlu0 %1333
  %v1335 = vadd.f32 %v1313, %v1319
  %v1336 = vadd.f32 %v1316, %v1322
  %v1337 = vadd.f32 %v1325, %v1331
  %v1338 = vadd.f32 %v1328, %v1334
  %v1339 = vmul.f32 %v1335, 0.001953125
  %v1340 = vmul.f32 %v1336, 0.001953125
  %v1341 = vmul.f32 %v1337, 0.001953125
  %v1342 = vmul.f32 %v1338, 0.001953125
  %v1343 = vmul.f32 %v1339, %v1339
  %v1344 = vmul.f32 %v1340, %v1340
  %v1345 = vsub.f32 %v1341, %v1343
  %v1346 = vsub.f32 %v1342, %v1344
  %v1347 = vadd.f32 %v1345, 1e-05
  %v1348 = vadd.f32 %v1346, 1e-05
  %v1349 = vrsqrt.pop %v1347
  %v1350 = vrsqrt.pop %v1348
  %v1351 = vmul.f32 %v1349, %v27
  %v1352 = vmul.f32 %v1350, %v28
  %v1353 = vmul.f32 %v1339, %v1351
  %v1354 = vmul.f32 %v1340, %v1352
  %v1355 = vsub.f32 %v29, %v1353
  %v1356 = vsub.f32 %v30, %v1354
  %1358 = vset.pattern.permute.xlu0 0
  %1359 = vperm.xlu0 %1358, %v1297
  %v1360 = vpop.permute.xlu0 %1359
  %1363 = vset.pattern.permute.xlu0 0
  %1364 = vperm.xlu0 %1363, %v1298
  %v1365 = vpop.permute.xlu0 %1364
  %v1367 = vmul.f32 %v1241, %v1360
  %v1368 = vmul.f32 %v1242, %v1360
  %v1369 = vmul.f32 %v1243, %v1365
  %v1370 = vmul.f32 %v1244, %v1365
  %v1371 = vmul.f32 %v1245, %v1360
  %v1372 = vmul.f32 %v1246, %v1360
  %v1373 = vmul.f32 %v1247, %v1365
  %v1374 = vmul.f32 %v1248, %v1365
  %1376 = vset.pattern.permute.xlu0 0
  %1377 = vperm.xlu0 %1376, %v1351
  %v1378 = vpop.permute.xlu0 %1377
  %1381 = vset.pattern.permute.xlu0 0
  %1382 = vperm.xlu0 %1381, %v1352
  %v1383 = vpop.permute.xlu0 %1382
  %v1385 = vmul.f32 %v292, %v1378
  %v1386 = vmul.f32 %v293, %v1378
  %v1387 = vmul.f32 %v294, %v1383
  %v1388 = vmul.f32 %v295, %v1383
  %v1389 = vmul.f32 %v296, %v1378
  %v1390 = vmul.f32 %v297, %v1378
  %v1391 = vmul.f32 %v298, %v1383
  %v1392 = vmul.f32 %v299, %v1383
  %v1393 = vadd.f32 %v1367, %v1385
  %v1394 = vadd.f32 %v1368, %v1386
  %v1395 = vadd.f32 %v1369, %v1387
  %v1396 = vadd.f32 %v1370, %v1388
  %v1397 = vadd.f32 %v1371, %v1389
  %v1398 = vadd.f32 %v1372, %v1390
  %v1399 = vadd.f32 %v1373, %v1391
  %v1400 = vadd.f32 %v1374, %v1392
  %v1401 = vadd.f32 %v1301, %v1355
  %v1402 = vadd.f32 %v1302, %v1356
  %1404 = vset.pattern.permute.xlu0 0
  %1405 = vperm.xlu0 %1404, %v1401
  %v1406 = vpop.permute.xlu0 %1405
  %1409 = vset.pattern.permute.xlu0 0
  %1410 = vperm.xlu0 %1409, %v1402
  %v1411 = vpop.permute.xlu0 %1410
  %v1413 = vadd.f32 %v1393, %v1406
  %v1414 = vadd.f32 %v1394, %v1406
  %v1415 = vadd.f32 %v1395, %v1411
  %v1416 = vadd.f32 %v1396, %v1411
  %v1417 = vadd.f32 %v1397, %v1406
  %v1418 = vadd.f32 %v1398, %v1406
  %v1419 = vadd.f32 %v1399, %v1411
  %v1420 = vadd.f32 %v1400, %v1411
  %v1421 = vmax.f32 %v1413, 0.0
  %v1422 = vmax.f32 %v1414, 0.0
  %v1423 = vmax.f32 %v1415, 0.0
  %v1424 = vmax.f32 %v1416, 0.0
  %v1425 = vmax.f32 %v1417, 0.0
  %v1426 = vmax.f32 %v1418, 0.0
  %v1427 = vmax.f32 %v1419, 0.0
  %v1428 = vmax.f32 %v1420, 0.0
  %1429 = vst [vmem:[%s4] sm:$0xff] %v1421
  %1430 = vst [vmem:[%s4 + $0x8] sm:$0xff] %v1422
  %1431 = vst [vmem:[%s4 + $0x10] sm:$0xff] %v1423
  %1432 = vst [vmem:[%s4 + $0x18] sm:$0xff] %v1424
  %1433 = vst [vmem:[%s4 + $0x20] sm:$0xff] %v1425
  %1434 = vst [vmem:[%s4 + $0x28] sm:$0xff] %v1426
  %1435 = vst [vmem:[%s4 + $0x30] sm:$0xff] %v1427
  %1436 = vst [vmem:[%s4 + $0x38] sm:$0xff] %v1428
  // Predicated region
  $region18: #{fold_bottleneck_ubn.1} parent=0 // pred_check
    _
  $region19: #{fold_bottleneck_ubn.1} parent=0 // pred_check_branch
    %1438 = sbr.rel (0) target = $region21
  $region20: #{fold_bottleneck_ubn.1} parent=0 // pred_region
    _
  $region21: #{fold_bottleneck_ubn.1} parent=0 // pred_fallthru
    _
  // Predicated region
  $region22: #{fold_bottleneck_ubn.1} parent=0 // pred_check
    _
  $region23: #{fold_bottleneck_ubn.1} parent=0 // pred_check_branch
    %1440 = sbr.rel (0) target = $region25
  $region24: #{fold_bottleneck_ubn.1} parent=0 // pred_region
    _
  $region25: #{fold_bottleneck_ubn.1} parent=0 // pred_fallthru
    _

</llo_original>
